<compile_context>
chip_gen: v5e
topology: v5e:2x2
jax: 0.10.0
libtpu: 0.0.40
codegen_flags: <defaults>
</compile_context>

<pallas_src>
import numpy as np
import jax
import jax.numpy as jnp
from jax.experimental import pallas as pl
from jax.experimental.pallas import tpu as pltpu


LANES = 128


def _round_up(x, m):
    return (x + m - 1) // m * m


def _cdiv(a, b):
    return -(-a // b)


def _tile_rows(m, tile):
    # Multiple of 8, and small enough that the grid has >= 2 steps whenever
    # m >= 16, so both v7x TensorCores get work under "parallel" semantics.
    return min(tile, _round_up(max(_cdiv(m, 2), 1), 8))


# ----------------------------- Pallas kernels ------------------------------

def _conv_pool_kernel(x_ref, w_ref, b_ref, o_ref):
    # x: (4, TM, K) bf16  -- the 4 positions of each 2x2 pooling window
    # w: (K, 128) bf16, b: (1, 128) f32, o: (TM, 128) bf16
    # Incremental max keeps only two live f32 (TM, 128) temporaries.
    w = w_ref[...]
    m = jnp.dot(x_ref[0], w, preferred_element_type=jnp.float32)
    m = jnp.maximum(m, jnp.dot(x_ref[1], w, preferred_element_type=jnp.float32))
    m = jnp.maximum(m, jnp.dot(x_ref[2], w, preferred_element_type=jnp.float32))
    m = jnp.maximum(m, jnp.dot(x_ref[3], w, preferred_element_type=jnp.float32))
    # relu(maxpool(conv) + b) == maxpool(relu(conv + b)): per-channel bias, monotone relu.
    o_ref[...] = jnp.maximum(m + b_ref[...], 0.0).astype(o_ref.dtype)


def _fc_stack_kernel(x_ref, w1_ref, b1_ref, w2_ref, b2_ref, w3_ref, b3_ref, o_ref):
    # x: (TB, 400) bf16; weights bf16 (128-wide); biases (1, 128) f32.
    h1 = jnp.dot(x_ref[...], w1_ref[...], preferred_element_type=jnp.float32) + b1_ref[...]
    h1 = jnp.maximum(h1, 0.0).astype(jnp.bfloat16)
    h2 = jnp.dot(h1, w2_ref[...], preferred_element_type=jnp.float32) + b2_ref[...]
    h2 = jnp.maximum(h2, 0.0).astype(jnp.bfloat16)
    out = jnp.dot(h2, w3_ref[...], preferred_element_type=jnp.float32) + b3_ref[...]
    o_ref[...] = out.astype(o_ref.dtype)


# ----------------------------- Pallas wrappers ------------------------------

def conv_pool_fused(x_nhwc, w_pad, b_pad, out_channels, *, k=5, tile_m=1024):
    """Valid kxk conv + bias + ReLU + 2x2 maxpool, fused into one gridded GEMM.

    x_nhwc: (B, H, W, C); w_pad: (C*k*k, 128) bf16 (prepared); b_pad: (1, 128) f32.
    Returns the pooled activation in NHWC, bf16: (B, PH, PW, out_channels).
    """
    B, H, W, C = x_nhwc.shape
    K = C * k * k
    assert w_pad.shape == (K, LANES)
    OH, OW = H - k + 1, W - k + 1
    PH, PW = OH // 2, OW // 2
    M = B * PH * PW

    # im2col grouped by pooling-window position (XLA layout glue; see TODO above).
    # Column order is (c, kh, kw) to match PyTorch (OC, IC, KH, KW).reshape(OC, -1).
    x_bf = x_nhwc.astype(jnp.bfloat16)
    groups = []
    for dy in range(2):
        for dx in range(2):
            slices = [
                x_bf[:, dy + kh: dy + kh + 2 * PH - 1: 2,
                        dx + kw: dx + kw + 2 * PW - 1: 2, :]
                for kh in range(k) for kw in range(k)
            ]
            p = jnp.stack(slices, axis=-1)          # (B, PH, PW, C, k*k)
            groups.append(p.reshape(M, K))
    patches = jnp.stack(groups, axis=0)             # (4, M, K)  -- K NOT padded

    TM = _tile_rows(M, tile_m)
    Mp = _round_up(M, TM)
    patches = jnp.pad(patches, ((0, 0), (0, Mp - M), (0, 0)))

    grid = (Mp // TM,)
    cost = pl.CostEstimate(
        flops=2 * 4 * Mp * K * LANES,
        transcendentals=0,
        bytes_accessed=4 * Mp * K * 2 + K * LANES * 2 + LANES * 4 + Mp * LANES * 2,
    )
    out = pl.pallas_call(
        _conv_pool_kernel,
        out_shape=jax.ShapeDtypeStruct((Mp, LANES), jnp.bfloat16),
        grid=grid,
        in_specs=[
            # Last block dim == full K (no reduction-dim zero pad in HBM).
            pl.BlockSpec((4, TM, K), lambda i: (0, i, 0)),
            pl.BlockSpec((K, LANES), lambda i: (0, 0)),
            pl.BlockSpec((1, LANES), lambda i: (0, 0)),
        ],
        out_specs=pl.BlockSpec((TM, LANES), lambda i: (i, 0)),
        compiler_params=pltpu.CompilerParams(dimension_semantics=("parallel",)),
        cost_estimate=cost,
    )(patches, w_pad, b_pad)

    return out[:M, :out_channels].reshape(B, PH, PW, out_channels)


def fc_stack(x, w1p, b1p, w2p, b2p, w3p, b3p, n_out, *, tile_b=1024):
    """Fused fc1(ReLU) -> fc2(ReLU) -> fc3 in a single Pallas kernel.

    x: (B, 400); prepared weights: w1p (400,128), w2p/w3p (128,128) bf16;
    biases (1,128) f32. Returns (B, n_out) f32.
    """
    B, K1 = x.shape
    assert w1p.shape == (K1, LANES) and K1 % 8 == 0

    TB = _tile_rows(B, tile_b)
    Bp = _round_up(B, TB)
    xp = jnp.pad(x.astype(jnp.bfloat16), ((0, Bp - B), (0, 0)))

    grid = (Bp // TB,)
    cost = pl.CostEstimate(
        flops=2 * Bp * (K1 * LANES + 2 * LANES * LANES),
        transcendentals=0,
        bytes_accessed=Bp * K1 * 2 + (K1 * LANES + 2 * LANES * LANES) * 2
                       + 3 * LANES * 4 + Bp * LANES * 4,
    )
    out = pl.pallas_call(
        _fc_stack_kernel,
        out_shape=jax.ShapeDtypeStruct((Bp, LANES), jnp.float32),
        grid=grid,
        in_specs=[
            pl.BlockSpec((TB, K1), lambda i: (i, 0)),
            pl.BlockSpec((K1, LANES), lambda i: (0, 0)),
            pl.BlockSpec((1, LANES), lambda i: (0, 0)),
            pl.BlockSpec((LANES, LANES), lambda i: (0, 0)),
            pl.BlockSpec((1, LANES), lambda i: (0, 0)),
            pl.BlockSpec((LANES, LANES), lambda i: (0, 0)),
            pl.BlockSpec((1, LANES), lambda i: (0, 0)),
        ],
        out_specs=pl.BlockSpec((TB, LANES), lambda i: (i, 0)),
        compiler_params=pltpu.CompilerParams(dimension_semantics=("parallel",)),
        cost_estimate=cost,
    )(xp, w1p, b1p, w2p, b2p, w3p, b3p)

    return out[:B, :n_out]


# ------------------------------ parameters ----------------------------------

# fc1 column permutation: PyTorch flattens NCHW (c, h, w); our pooled activation
# is NHWC-flattened (h, w, c). Permuting fc1's columns once keeps exact PyTorch
# semantics without transposing the activation.
_C2, _S2 = 16, 5
_FC1_PERM = np.array(
    [c * (_S2 * _S2) + h * _S2 + w
     for h in range(_S2) for w in range(_S2) for c in range(_C2)],
    dtype=np.int32,
)


def init_lenet_params(key):
    def uinit(key, shape, fan_in):
        bound = 1.0 / jnp.sqrt(fan_in)
        return jax.random.uniform(key, shape, jnp.float32, -bound, bound)

    ks = jax.random.split(key, 10)
    return {
        "cn1_w": uinit(ks[0], (6, 3, 5, 5), 3 * 5 * 5),
        "cn1_b": uinit(ks[1], (6,), 3 * 5 * 5),
        "cn2_w": uinit(ks[2], (16, 6, 5, 5), 6 * 5 * 5),
        "cn2_b": uinit(ks[3], (16,), 6 * 5 * 5),
        "fc1_w": uinit(ks[4], (120, 400), 400),   # PyTorch Linear: (out, in)
        "fc1_b": uinit(ks[5], (120,), 400),
        "fc2_w": uinit(ks[6], (84, 120), 120),
        "fc2_b": uinit(ks[7], (84,), 120),
        "fc3_w": uinit(ks[8], (10, 84), 84),
        "fc3_b": uinit(ks[9], (10,), 84),
    }


def prepare_lenet_params(params):
    """One-time weight prep: transpose, pad to 128-wide N, cast to bf16, permute fc1."""
    def conv_prep(w_oihw, b):
        oc = int(w_oihw.shape[0])
        kdim = int(np.prod(w_oihw.shape[1:]))
        wp = jnp.zeros((kdim, LANES), jnp.bfloat16).at[:, :oc].set(
            w_oihw.reshape(oc, kdim).T.astype(jnp.bfloat16))
        bp = jnp.zeros((1, LANES), jnp.float32).at[0, :oc].set(b.astype(jnp.float32))
        return wp, bp

    def fc_prep(w, b, k_rows):
        n, kin = w.shape
        wp = jnp.zeros((k_rows, LANES), jnp.bfloat16).at[:kin, :n].set(
            w.T.astype(jnp.bfloat16))
        bp = jnp.zeros((1, LANES), jnp.float32).at[0, :n].set(b.astype(jnp.float32))
        return wp, bp

    cn1_w, cn1_b = conv_prep(params["cn1_w"], params["cn1_b"])
    cn2_w, cn2_b = conv_prep(params["cn2_w"], params["cn2_b"])
    fc1_w, fc1_b = fc_prep(params["fc1_w"][:, _FC1_PERM], params["fc1_b"], 400)
    fc2_w, fc2_b = fc_prep(params["fc2_w"], params["fc2_b"], LANES)
    fc3_w, fc3_b = fc_prep(params["fc3_w"], params["fc3_b"], LANES)
    return {
        "cn1_w": cn1_w, "cn1_b": cn1_b,
        "cn2_w": cn2_w, "cn2_b": cn2_b,
        "fc1_w": fc1_w, "fc1_b": fc1_b,
        "fc2_w": fc2_w, "fc2_b": fc2_b,
        "fc3_w": fc3_w, "fc3_b": fc3_b,
    }


# ------------------------------ LeNet forward -------------------------------

@jax.jit
def lenet_forward(x_nchw, prep):
    # x: (B, 3, 32, 32) NCHW, float32 (as in PyTorch)
    x = jnp.transpose(x_nchw, (0, 2, 3, 1)).astype(jnp.bfloat16)       # -> NHWC bf16

    # conv1 (3->6, 5x5) + ReLU + 2x2 maxpool, fused
    x = conv_pool_fused(x, prep["cn1_w"], prep["cn1_b"], 6)            # (B, 14, 14, 6)
    # conv2 (6->16, 5x5) + ReLU + 2x2 maxpool, fused
    x = conv_pool_fused(x, prep["cn2_w"], prep["cn2_b"], 16)           # (B, 5, 5, 16)

    B = x.shape[0]
    x_flat = x.reshape(B, _S2 * _S2 * _C2)                             # NHWC flatten (h, w, c)

    # fc1 -> ReLU -> fc2 -> ReLU -> fc3, all in one kernel (fc1 cols pre-permuted)
    return fc_stack(x_flat, prep["fc1_w"], prep["fc1_b"],
                    prep["fc2_w"], prep["fc2_b"],
                    prep["fc3_w"], prep["fc3_b"], 10)                  # (B, 10)


if __name__ == "__main__":
    key = jax.random.PRNGKey(0)
    k_params, k_x = jax.random.split(key)
    params = init_lenet_params(k_params)
    prep = prepare_lenet_params(params)          # one-time weight prep (not per step)
    # LeNet's fc1 (16*5*5 inputs) implies a 32x32 spatial input; keep batch small.
    x = jax.random.normal(k_x, (2, 3, 32, 32), dtype=jnp.float32)
    out = lenet_forward(x, prep)
    out = jax.block_until_ready(out)
    assert out.shape == (2, 10)
    assert bool(jnp.all(jnp.isfinite(out)))
    print("KERNEL_OK")
</pallas_src>

<mosaic_0001>
module attributes {stable_mosaic.version = 11 : i64} {
  func.func @_conv_pool_kernel(%arg0: i32, %arg1: memref<4x200x75xbf16, #tpu.memory_space<vmem>>, %arg2: memref<75x128xbf16, #tpu.memory_space<vmem>>, %arg3: memref<1x128xf32, #tpu.memory_space<vmem>>, %arg4: memref<200x128xbf16, #tpu.memory_space<vmem>>) attributes {dimension_semantics = [#tpu.dimension_semantics<parallel>], iteration_bounds = array<i64: 2>, scalar_prefetch = 0 : i64, scratch_operands = 0 : i64, tpu.core_type = #tpu.core_type<tc>, window_params = [{transform_indices = @transform_0, window_bounds = array<i64: 4, 200, 75>}, {pipeline_mode = #tpu.pipeline_mode<synchronous>, transform_indices = @transform_1, window_bounds = array<i64: 75, 128>}, {pipeline_mode = #tpu.pipeline_mode<synchronous>, transform_indices = @transform_2, window_bounds = array<i64: 1, 128>}, {transform_indices = @transform_3, window_bounds = array<i64: 200, 128>}]} {
    %c0 = arith.constant 0 : index
    %c0_0 = arith.constant 0 : index
    %0 = vector.load %arg2[%c0, %c0_0] : memref<75x128xbf16, #tpu.memory_space<vmem>>, vector<75x128xbf16>
    %c0_1 = arith.constant 0 : index
    %c0_2 = arith.constant 0 : index
    %c0_3 = arith.constant 0 : index
    %1 = vector.load %arg1[%c0_1, %c0_2, %c0_3] : memref<4x200x75xbf16, #tpu.memory_space<vmem>>, vector<1x200x75xbf16>
    %2 = vector.shape_cast %1 : vector<1x200x75xbf16> to vector<200x75xbf16>
    %cst = arith.constant dense<0.000000e+00> : vector<200x128xf32>
    %3 = tpu.matmul %2, %0, %cst {dimension_numbers = #tpu.dot_dimension_numbers<[1], [0], [0], [1], [0, 0, 1, 1], [], []>} : vector<200x75xbf16>, vector<75x128xbf16>, vector<200x128xf32> -> vector<200x128xf32>
    %c1 = arith.constant 1 : index
    %c0_4 = arith.constant 0 : index
    %c0_5 = arith.constant 0 : index
    %4 = vector.load %arg1[%c1, %c0_4, %c0_5] : memref<4x200x75xbf16, #tpu.memory_space<vmem>>, vector<1x200x75xbf16>
    %5 = vector.shape_cast %4 : vector<1x200x75xbf16> to vector<200x75xbf16>
    %cst_6 = arith.constant dense<0.000000e+00> : vector<200x128xf32>
    %6 = tpu.matmul %5, %0, %cst_6 {dimension_numbers = #tpu.dot_dimension_numbers<[1], [0], [0], [1], [0, 0, 1, 1], [], []>} : vector<200x75xbf16>, vector<75x128xbf16>, vector<200x128xf32> -> vector<200x128xf32>
    %7 = arith.maximumf %3, %6 : vector<200x128xf32>
    %c2 = arith.constant 2 : index
    %c0_7 = arith.constant 0 : index
    %c0_8 = arith.constant 0 : index
    %8 = vector.load %arg1[%c2, %c0_7, %c0_8] : memref<4x200x75xbf16, #tpu.memory_space<vmem>>, vector<1x200x75xbf16>
    %9 = vector.shape_cast %8 : vector<1x200x75xbf16> to vector<200x75xbf16>
    %cst_9 = arith.constant dense<0.000000e+00> : vector<200x128xf32>
    %10 = tpu.matmul %9, %0, %cst_9 {dimension_numbers = #tpu.dot_dimension_numbers<[1], [0], [0], [1], [0, 0, 1, 1], [], []>} : vector<200x75xbf16>, vector<75x128xbf16>, vector<200x128xf32> -> vector<200x128xf32>
    %11 = arith.maximumf %7, %10 : vector<200x128xf32>
    %c3 = arith.constant 3 : index
    %c0_10 = arith.constant 0 : index
    %c0_11 = arith.constant 0 : index
    %12 = vector.load %arg1[%c3, %c0_10, %c0_11] : memref<4x200x75xbf16, #tpu.memory_space<vmem>>, vector<1x200x75xbf16>
    %13 = vector.shape_cast %12 : vector<1x200x75xbf16> to vector<200x75xbf16>
    %cst_12 = arith.constant dense<0.000000e+00> : vector<200x128xf32>
    %14 = tpu.matmul %13, %0, %cst_12 {dimension_numbers = #tpu.dot_dimension_numbers<[1], [0], [0], [1], [0, 0, 1, 1], [], []>} : vector<200x75xbf16>, vector<75x128xbf16>, vector<200x128xf32> -> vector<200x128xf32>
    %15 = arith.maximumf %11, %14 : vector<200x128xf32>
    %c0_13 = arith.constant 0 : index
    %c0_14 = arith.constant 0 : index
    %16 = vector.load %arg3[%c0_13, %c0_14] : memref<1x128xf32, #tpu.memory_space<vmem>>, vector<1x128xf32>
    %17 = vector.broadcast %16 : vector<1x128xf32> to vector<200x128xf32>
    %18 = arith.addf %15, %17 : vector<200x128xf32>
    %cst_15 = arith.constant 0.000000e+00 : f32
    %19 = vector.broadcast %cst_15 : f32 to vector<200x128xf32>
    %20 = arith.maximumf %18, %19 : vector<200x128xf32>
    %21 = arith.truncf %20 : vector<200x128xf32> to vector<200x128xbf16>
    %c0_16 = arith.constant 0 : index
    %c0_17 = arith.constant 0 : index
    %22 = vector.load %arg4[%c0_16, %c0_17] : memref<200x128xbf16, #tpu.memory_space<vmem>>, vector<200x128xbf16>
    tpu.vector_store %arg4[%c0_16, %c0_17], %21 {strides = array<i32>} : memref<200x128xbf16, #tpu.memory_space<vmem>>, vector<200x128xbf16>,
    return
  }
  func.func @transform_0(%arg0: i32) -> (i32, i32, i32) {
    %c0_i32 = arith.constant 0 : i32
    %c0_i32_0 = arith.constant 0 : i32
    %c0_i32_1 = arith.constant 0 : i32
    return %c0_i32, %arg0, %c0_i32_0 : i32, i32, i32
  }
  func.func @transform_1(%arg0: i32) -> (i32, i32) {
    %c0_i32 = arith.constant 0 : i32
    %c0_i32_0 = arith.constant 0 : i32
    %c0_i32_1 = arith.constant 0 : i32
    return %c0_i32, %c0_i32_0 : i32, i32
  }
  func.func @transform_2(%arg0: i32) -> (i32, i32) {
    %c0_i32 = arith.constant 0 : i32
    %c0_i32_0 = arith.constant 0 : i32
    %c0_i32_1 = arith.constant 0 : i32
    return %c0_i32, %c0_i32_0 : i32, i32
  }
  func.func @transform_3(%arg0: i32) -> (i32, i32) {
    %c0_i32 = arith.constant 0 : i32
    %c0_i32_0 = arith.constant 0 : i32
    return %arg0, %c0_i32 : i32, i32
  }
}

module attributes {stable_mosaic.version = 11 : i64} {
  func.func @_conv_pool_kernel(%arg0: i32, %arg1: memref<4x32x150xbf16, #tpu.memory_space<vmem>>, %arg2: memref<150x128xbf16, #tpu.memory_space<vmem>>, %arg3: memref<1x128xf32, #tpu.memory_space<vmem>>, %arg4: memref<32x128xbf16, #tpu.memory_space<vmem>>) attributes {dimension_semantics = [#tpu.dimension_semantics<parallel>], iteration_bounds = array<i64: 2>, scalar_prefetch = 0 : i64, scratch_operands = 0 : i64, tpu.core_type = #tpu.core_type<tc>, window_params = [{transform_indices = @transform_0, window_bounds = array<i64: 4, 32, 150>}, {pipeline_mode = #tpu.pipeline_mode<synchronous>, transform_indices = @transform_1, window_bounds = array<i64: 150, 128>}, {pipeline_mode = #tpu.pipeline_mode<synchronous>, transform_indices = @transform_2, window_bounds = array<i64: 1, 128>}, {transform_indices = @transform_3, window_bounds = array<i64: 32, 128>}]} {
    %c0 = arith.constant 0 : index
    %c0_0 = arith.constant 0 : index
    %0 = vector.load %arg2[%c0, %c0_0] : memref<150x128xbf16, #tpu.memory_space<vmem>>, vector<150x128xbf16>
    %c0_1 = arith.constant 0 : index
    %c0_2 = arith.constant 0 : index
    %c0_3 = arith.constant 0 : index
    %1 = vector.load %arg1[%c0_1, %c0_2, %c0_3] : memref<4x32x150xbf16, #tpu.memory_space<vmem>>, vector<1x32x150xbf16>
    %2 = vector.shape_cast %1 : vector<1x32x150xbf16> to vector<32x150xbf16>
    %cst = arith.constant dense<0.000000e+00> : vector<32x128xf32>
    %3 = tpu.matmul %2, %0, %cst {dimension_numbers = #tpu.dot_dimension_numbers<[1], [0], [0], [1], [0, 0, 1, 1], [], []>} : vector<32x150xbf16>, vector<150x128xbf16>, vector<32x128xf32> -> vector<32x128xf32>
    %c1 = arith.constant 1 : index
    %c0_4 = arith.constant 0 : index
    %c0_5 = arith.constant 0 : index
    %4 = vector.load %arg1[%c1, %c0_4, %c0_5] : memref<4x32x150xbf16, #tpu.memory_space<vmem>>, vector<1x32x150xbf16>
    %5 = vector.shape_cast %4 : vector<1x32x150xbf16> to vector<32x150xbf16>
    %cst_6 = arith.constant dense<0.000000e+00> : vector<32x128xf32>
    %6 = tpu.matmul %5, %0, %cst_6 {dimension_numbers = #tpu.dot_dimension_numbers<[1], [0], [0], [1], [0, 0, 1, 1], [], []>} : vector<32x150xbf16>, vector<150x128xbf16>, vector<32x128xf32> -> vector<32x128xf32>
    %7 = arith.maximumf %3, %6 : vector<32x128xf32>
    %c2 = arith.constant 2 : index
    %c0_7 = arith.constant 0 : index
    %c0_8 = arith.constant 0 : index
    %8 = vector.load %arg1[%c2, %c0_7, %c0_8] : memref<4x32x150xbf16, #tpu.memory_space<vmem>>, vector<1x32x150xbf16>
    %9 = vector.shape_cast %8 : vector<1x32x150xbf16> to vector<32x150xbf16>
    %cst_9 = arith.constant dense<0.000000e+00> : vector<32x128xf32>
    %10 = tpu.matmul %9, %0, %cst_9 {dimension_numbers = #tpu.dot_dimension_numbers<[1], [0], [0], [1], [0, 0, 1, 1], [], []>} : vector<32x150xbf16>, vector<150x128xbf16>, vector<32x128xf32> -> vector<32x128xf32>
    %11 = arith.maximumf %7, %10 : vector<32x128xf32>
    %c3 = arith.constant 3 : index
    %c0_10 = arith.constant 0 : index
    %c0_11 = arith.constant 0 : index
    %12 = vector.load %arg1[%c3, %c0_10, %c0_11] : memref<4x32x150xbf16, #tpu.memory_space<vmem>>, vector<1x32x150xbf16>
    %13 = vector.shape_cast %12 : vector<1x32x150xbf16> to vector<32x150xbf16>
    %cst_12 = arith.constant dense<0.000000e+00> : vector<32x128xf32>
    %14 = tpu.matmul %13, %0, %cst_12 {dimension_numbers = #tpu.dot_dimension_numbers<[1], [0], [0], [1], [0, 0, 1, 1], [], []>} : vector<32x150xbf16>, vector<150x128xbf16>, vector<32x128xf32> -> vector<32x128xf32>
    %15 = arith.maximumf %11, %14 : vector<32x128xf32>
    %c0_13 = arith.constant 0 : index
    %c0_14 = arith.constant 0 : index
    %16 = vector.load %arg3[%c0_13, %c0_14] : memref<1x128xf32, #tpu.memory_space<vmem>>, vector<1x128xf32>
    %17 = vector.broadcast %16 : vector<1x128xf32> to vector<32x128xf32>
    %18 = arith.addf %15, %17 : vector<32x128xf32>
    %cst_15 = arith.constant 0.000000e+00 : f32
    %19 = vector.broadcast %cst_15 : f32 to vector<32x128xf32>
    %20 = arith.maximumf %18, %19 : vector<32x128xf32>
    %21 = arith.truncf %20 : vector<32x128xf32> to vector<32x128xbf16>
    %c0_16 = arith.constant 0 : index
    %c0_17 = arith.constant 0 : index
    %22 = vector.load %arg4[%c0_16, %c0_17] : memref<32x128xbf16, #tpu.memory_space<vmem>>, vector<32x128xbf16>
    tpu.vector_store %arg4[%c0_16, %c0_17], %21 {strides = array<i32>} : memref<32x128xbf16, #tpu.memory_space<vmem>>, vector<32x128xbf16>,
    return
  }
  func.func @transform_0(%arg0: i32) -> (i32, i32, i32) {
    %c0_i32 = arith.constant 0 : i32
    %c0_i32_0 = arith.constant 0 : i32
    %c0_i32_1 = arith.constant 0 : i32
    return %c0_i32, %arg0, %c0_i32_0 : i32, i32, i32
  }
  func.func @transform_1(%arg0: i32) -> (i32, i32) {
    %c0_i32 = arith.constant 0 : i32
    %c0_i32_0 = arith.constant 0 : i32
    %c0_i32_1 = arith.constant 0 : i32
    return %c0_i32, %c0_i32_0 : i32, i32
  }
  func.func @transform_2(%arg0: i32) -> (i32, i32) {
    %c0_i32 = arith.constant 0 : i32
    %c0_i32_0 = arith.constant 0 : i32
    %c0_i32_1 = arith.constant 0 : i32
    return %c0_i32, %c0_i32_0 : i32, i32
  }
  func.func @transform_3(%arg0: i32) -> (i32, i32) {
    %c0_i32 = arith.constant 0 : i32
    %c0_i32_0 = arith.constant 0 : i32
    return %arg0, %c0_i32 : i32, i32
  }
}

module attributes {stable_mosaic.version = 11 : i64} {
  func.func @_fc_stack_kernel(%arg0: i32, %arg1: memref<8x400xbf16, #tpu.memory_space<vmem>>, %arg2: memref<400x128xbf16, #tpu.memory_space<vmem>>, %arg3: memref<1x128xf32, #tpu.memory_space<vmem>>, %arg4: memref<128x128xbf16, #tpu.memory_space<vmem>>, %arg5: memref<1x128xf32, #tpu.memory_space<vmem>>, %arg6: memref<128x128xbf16, #tpu.memory_space<vmem>>, %arg7: memref<1x128xf32, #tpu.memory_space<vmem>>, %arg8: memref<8x128xf32, #tpu.memory_space<vmem>>) attributes {dimension_semantics = [#tpu.dimension_semantics<parallel>], iteration_bounds = array<i64: 1>, scalar_prefetch = 0 : i64, scratch_operands = 0 : i64, tpu.core_type = #tpu.core_type<tc>, window_params = [{transform_indices = @transform_0, window_bounds = array<i64: 8, 400>}, {pipeline_mode = #tpu.pipeline_mode<synchronous>, transform_indices = @transform_1, window_bounds = array<i64: 400, 128>}, {pipeline_mode = #tpu.pipeline_mode<synchronous>, transform_indices = @transform_2, window_bounds = array<i64: 1, 128>}, {pipeline_mode = #tpu.pipeline_mode<synchronous>, transform_indices = @transform_3, window_bounds = array<i64: 128, 128>}, {pipeline_mode = #tpu.pipeline_mode<synchronous>, transform_indices = @transform_4, window_bounds = array<i64: 1, 128>}, {pipeline_mode = #tpu.pipeline_mode<synchronous>, transform_indices = @transform_5, window_bounds = array<i64: 128, 128>}, {pipeline_mode = #tpu.pipeline_mode<synchronous>, transform_indices = @transform_6, window_bounds = array<i64: 1, 128>}, {transform_indices = @transform_7, window_bounds = array<i64: 8, 128>}]} {
    %c0 = arith.constant 0 : index
    %c0_0 = arith.constant 0 : index
    %0 = vector.load %arg1[%c0, %c0_0] : memref<8x400xbf16, #tpu.memory_space<vmem>>, vector<8x400xbf16>
    %c0_1 = arith.constant 0 : index
    %c0_2 = arith.constant 0 : index
    %1 = vector.load %arg2[%c0_1, %c0_2] : memref<400x128xbf16, #tpu.memory_space<vmem>>, vector<400x128xbf16>
    %cst = arith.constant dense<0.000000e+00> : vector<8x128xf32>
    %2 = tpu.matmul %0, %1, %cst {dimension_numbers = #tpu.dot_dimension_numbers<[1], [0], [0], [1], [0, 0, 1, 1], [], []>} : vector<8x400xbf16>, vector<400x128xbf16>, vector<8x128xf32> -> vector<8x128xf32>
    %c0_3 = arith.constant 0 : index
    %c0_4 = arith.constant 0 : index
    %3 = vector.load %arg3[%c0_3, %c0_4] : memref<1x128xf32, #tpu.memory_space<vmem>>, vector<1x128xf32>
    %4 = vector.broadcast %3 : vector<1x128xf32> to vector<8x128xf32>
    %5 = arith.addf %2, %4 : vector<8x128xf32>
    %cst_5 = arith.constant 0.000000e+00 : f32
    %6 = vector.broadcast %cst_5 : f32 to vector<8x128xf32>
    %7 = arith.maximumf %5, %6 : vector<8x128xf32>
    %8 = arith.truncf %7 : vector<8x128xf32> to vector<8x128xbf16>
    %c0_6 = arith.constant 0 : index
    %c0_7 = arith.constant 0 : index
    %9 = vector.load %arg4[%c0_6, %c0_7] : memref<128x128xbf16, #tpu.memory_space<vmem>>, vector<128x128xbf16>
    %cst_8 = arith.constant dense<0.000000e+00> : vector<8x128xf32>
    %10 = tpu.matmul %8, %9, %cst_8 {dimension_numbers = #tpu.dot_dimension_numbers<[1], [0], [0], [1], [0, 0, 1, 1], [], []>} : vector<8x128xbf16>, vector<128x128xbf16>, vector<8x128xf32> -> vector<8x128xf32>
    %c0_9 = arith.constant 0 : index
    %c0_10 = arith.constant 0 : index
    %11 = vector.load %arg5[%c0_9, %c0_10] : memref<1x128xf32, #tpu.memory_space<vmem>>, vector<1x128xf32>
    %12 = vector.broadcast %11 : vector<1x128xf32> to vector<8x128xf32>
    %13 = arith.addf %10, %12 : vector<8x128xf32>
    %cst_11 = arith.constant 0.000000e+00 : f32
    %14 = vector.broadcast %cst_11 : f32 to vector<8x128xf32>
    %15 = arith.maximumf %13, %14 : vector<8x128xf32>
    %16 = arith.truncf %15 : vector<8x128xf32> to vector<8x128xbf16>
    %c0_12 = arith.constant 0 : index
    %c0_13 = arith.constant 0 : index
    %17 = vector.load %arg6[%c0_12, %c0_13] : memref<128x128xbf16, #tpu.memory_space<vmem>>, vector<128x128xbf16>
    %cst_14 = arith.constant dense<0.000000e+00> : vector<8x128xf32>
    %18 = tpu.matmul %16, %17, %cst_14 {dimension_numbers = #tpu.dot_dimension_numbers<[1], [0], [0], [1], [0, 0, 1, 1], [], []>} : vector<8x128xbf16>, vector<128x128xbf16>, vector<8x128xf32> -> vector<8x128xf32>
    %c0_15 = arith.constant 0 : index
    %c0_16 = arith.constant 0 : index
    %19 = vector.load %arg7[%c0_15, %c0_16] : memref<1x128xf32, #tpu.memory_space<vmem>>, vector<1x128xf32>
    %20 = vector.broadcast %19 : vector<1x128xf32> to vector<8x128xf32>
    %21 = arith.addf %18, %20 : vector<8x128xf32>
    %c0_17 = arith.constant 0 : index
    %c0_18 = arith.constant 0 : index
    %22 = vector.load %arg8[%c0_17, %c0_18] : memref<8x128xf32, #tpu.memory_space<vmem>>, vector<8x128xf32>
    tpu.vector_store %arg8[%c0_17, %c0_18], %21 {strides = array<i32>} : memref<8x128xf32, #tpu.memory_space<vmem>>, vector<8x128xf32>,
    return
  }
  func.func @transform_0(%arg0: i32) -> (i32, i32) {
    %c0_i32 = arith.constant 0 : i32
    %c0_i32_0 = arith.constant 0 : i32
    return %arg0, %c0_i32 : i32, i32
  }
  func.func @transform_1(%arg0: i32) -> (i32, i32) {
    %c0_i32 = arith.constant 0 : i32
    %c0_i32_0 = arith.constant 0 : i32
    %c0_i32_1 = arith.constant 0 : i32
    return %c0_i32, %c0_i32_0 : i32, i32
  }
  func.func @transform_2(%arg0: i32) -> (i32, i32) {
    %c0_i32 = arith.constant 0 : i32
    %c0_i32_0 = arith.constant 0 : i32
    %c0_i32_1 = arith.constant 0 : i32
    return %c0_i32, %c0_i32_0 : i32, i32
  }
  func.func @transform_3(%arg0: i32) -> (i32, i32) {
    %c0_i32 = arith.constant 0 : i32
    %c0_i32_0 = arith.constant 0 : i32
    %c0_i32_1 = arith.constant 0 : i32
    return %c0_i32, %c0_i32_0 : i32, i32
  }
  func.func @transform_4(%arg0: i32) -> (i32, i32) {
    %c0_i32 = arith.constant 0 : i32
    %c0_i32_0 = arith.constant 0 : i32
    %c0_i32_1 = arith.constant 0 : i32
    return %c0_i32, %c0_i32_0 : i32, i32
  }
  func.func @transform_5(%arg0: i32) -> (i32, i32) {
    %c0_i32 = arith.constant 0 : i32
    %c0_i32_0 = arith.constant 0 : i32
    %c0_i32_1 = arith.constant 0 : i32
    return %c0_i32, %c0_i32_0 : i32, i32
  }
  func.func @transform_6(%arg0: i32) -> (i32, i32) {
    %c0_i32 = arith.constant 0 : i32
    %c0_i32_0 = arith.constant 0 : i32
    %c0_i32_1 = arith.constant 0 : i32
    return %c0_i32, %c0_i32_0 : i32, i32
  }
  func.func @transform_7(%arg0: i32) -> (i32, i32) {
    %c0_i32 = arith.constant 0 : i32
    %c0_i32_0 = arith.constant 0 : i32
    return %arg0, %c0_i32 : i32, i32
  }
}

</mosaic_0001>

<llo_original>
// kernel: lenet_forward.3
$region0: #{lenet_forward.3}
  #allocation0 [shape = 'u32[]', space=smem, size = 0x4, offset = 0x4, fixed_abs, tag = 'smem constant byte address 0x4 - core index']
  #allocation1 [shape = 'u32[72,128]{1,0:T(1,128)}', space=vmem, size = 0x9000, scoped, tag = 'internal scratch']
  %s0 = inlined_call_operand.vmem [shape: bf16[4,400,75], index: 0, kind: input, shape index: {}]
  %s1 = inlined_call_operand.vmem [shape: bf16[75,128], index: 1, kind: input, shape index: {}]
  %s2 = inlined_call_operand.vmem [shape: f32[1,128], index: 2, kind: input, shape index: {}]
  %s3 = inlined_call_operand.vmem [shape: bf16[400,128], index: 3, kind: output, shape index: {}]
  %s4 = sld [smem:[#allocation0]]
  $region86: #{lenet_forward.3} parent=0
    _
  %s6 = ssub.s32 1, %s4
  %s7 = scalar_select 0, %s6, %s4
  $region1: #{lenet_forward.3} parent=0
    #allocation2 [shape = 'u8[409600]{0}', space=vmem, size = 0x64000, scoped, tag = 'input window, operand 0']
    loop: start=0, step=1, limit=4
    $region2: #{lenet_forward.3} parent=1 // loop_pre_header
      _
    $region3: #{lenet_forward.3} parent=1 // loop_header
      %s9 = sphi 0, %s13
      %p10 = scmp.ge.s32.totalorder %s9, 4
      %s19 = sphi 0, %s21
      %s22 = sphi 0, %s19
      %s23 = sphi 0, %s22
      %s39 = sphi 0, %s23
      %s43 = sphi 0, %s43
      %s45 = sphi 0, %s43
      %s46 = sphi 0, %s45
      %s60 = sphi 0, %s46
      %s64 = sphi 0, %s64
      %s66 = sphi 0, %s64
      %s67 = sphi 0, %s66
      %s81 = sphi 0, %s67
      %s87 = sphi 0, %s89
      %s90 = sphi 0, %s87
      %s91 = sphi 0, %s90
      %s107 = sphi 0, %s91
    $region4: #{lenet_forward.3} parent=1 // loop_header_branch
      %12 = sbr.rel (%p10) target = $region8
    $region5: #{lenet_forward.3} parent=1 // loop_body
      %s14 = ssub.s32 %s9, 1
      %s15 = ssub.s32 %s9, 2
      %s16 = sadd.s32 %s9, 1
      %s17 = ssub.s32 %s9, %s16
      %p18 = scmp.eq.s32.totalorder %s17, 0
      %s20 = sadd.s32 %s19, 1
      %s21 = scalar_select %p18, %s19, %s20
      %p24 = pneg %p18
      %p25 = scmp.eq.s32.totalorder %s9, 1
      %p26 = por %p24, %p25
      %p27 = scmp.ne.s32.totalorder %s19, %s22
      %p28 = scmp.eq.s32.totalorder %s9, 0
      %p29 = por %p27, %p28
      %p30 = scmp.ne.s32.totalorder %s19, %s22
      %p31 = scmp.eq.s32.totalorder %s14, 1
      %p32 = por %p30, %p31
      %p33 = scmp.ne.s32.totalorder %s22, %s23
      %p34 = scmp.eq.s32.totalorder %s14, 0
      %p35 = por %p33, %p34
      %p36 = scmp.ne.s32.totalorder %s22, %s23
      %p37 = scmp.eq.s32.totalorder %s15, 1
      %p38 = por %p36, %p37
      %p40 = scmp.ne.s32.totalorder %s23, %s39
      %p41 = scmp.eq.s32.totalorder %s15, 0
      %p42 = por %p40, %p41
      %s44 = sadd.s32 %s43, 1
      %p47 = scmp.eq.s32.totalorder %s9, 1
      %p48 = scmp.ne.s32.totalorder %s43, %s45
      %p49 = scmp.eq.s32.totalorder %s9, 0
      %p50 = por %p48, %p49
      %p51 = scmp.ne.s32.totalorder %s43, %s45
      %p52 = scmp.eq.s32.totalorder %s14, 1
      %p53 = por %p51, %p52
      %p54 = scmp.ne.s32.totalorder %s45, %s46
      %p55 = scmp.eq.s32.totalorder %s14, 0
      %p56 = por %p54, %p55
      %p57 = scmp.ne.s32.totalorder %s45, %s46
      %p58 = scmp.eq.s32.totalorder %s15, 1
      %p59 = por %p57, %p58
      %p61 = scmp.ne.s32.totalorder %s46, %s60
      %p62 = scmp.eq.s32.totalorder %s15, 0
      %p63 = por %p61, %p62
      %s65 = sadd.s32 %s64, 1
      %p68 = scmp.eq.s32.totalorder %s9, 1
      %p69 = scmp.ne.s32.totalorder %s64, %s66
      %p70 = scmp.eq.s32.totalorder %s9, 0
      %p71 = por %p69, %p70
      %p72 = scmp.ne.s32.totalorder %s64, %s66
      %p73 = scmp.eq.s32.totalorder %s14, 1
      %p74 = por %p72, %p73
      %p75 = scmp.ne.s32.totalorder %s66, %s67
      %p76 = scmp.eq.s32.totalorder %s14, 0
      %p77 = por %p75, %p76
      %p78 = scmp.ne.s32.totalorder %s66, %s67
      %p79 = scmp.eq.s32.totalorder %s15, 1
      %p80 = por %p78, %p79
      %p82 = scmp.ne.s32.totalorder %s67, %s81
      %p83 = scmp.eq.s32.totalorder %s15, 0
      %p84 = por %p82, %p83
      %s85 = ssub.s32 %s9, %s16
      %p86 = scmp.eq.s32.totalorder %s85, 0
      %s88 = sadd.s32 %s87, 1
      %s89 = scalar_select %p86, %s87, %s88
      %p92 = pneg %p86
      %p93 = scmp.eq.s32.totalorder %s9, 1
      %p94 = por %p92, %p93
      %p95 = scmp.ne.s32.totalorder %s87, %s90
      %p96 = scmp.eq.s32.totalorder %s9, 0
      %p97 = por %p95, %p96
      %p98 = scmp.ne.s32.totalorder %s87, %s90
      %p99 = scmp.eq.s32.totalorder %s14, 1
      %p100 = por %p98, %p99
      %p101 = scmp.ne.s32.totalorder %s90, %s91
      %p102 = scmp.eq.s32.totalorder %s14, 0
      %p103 = por %p101, %p102
      %p104 = scmp.ne.s32.totalorder %s90, %s91
      %p105 = scmp.eq.s32.totalorder %s15, 1
      %p106 = por %p104, %p105
      %p108 = scmp.ne.s32.totalorder %s91, %s107
      %p109 = scmp.eq.s32.totalorder %s15, 0
      %p110 = por %p108, %p109
      %p111 = scmp.le.s32.totalorder 1, %s9
      %p112 = scmp.lt.s32.totalorder %s9, 3
      %p113 = pnand %p111, %p112
      %p114 = pneg %p113
      // Predicated region
      $region9: #{lenet_forward.3} parent=5 // pred_check
        _
      $region10: #{lenet_forward.3} parent=5 // pred_check_branch
        %116 = sbr.rel (%p113) target = $region12
      $region11: #{lenet_forward.3} parent=5 // pred_region
        %s117 = ssub.s32 %s9, 1
        // Predicated region
        $region13: #{lenet_forward.3} parent=11 // pred_check
          %p118 = pneg %p56
        $region14: #{lenet_forward.3} parent=11 // pred_check_branch
          %120 = sbr.rel (%p118) target = $region16
        $region15: #{lenet_forward.3} parent=11 // pred_region
          _
        $region16: #{lenet_forward.3} parent=11 // pred_fallthru
          _
        // Predicated region
        $region17: #{lenet_forward.3} parent=11 // pred_check
          %p121 = pneg %p77
        $region18: #{lenet_forward.3} parent=11 // pred_check_branch
          %123 = sbr.rel (%p121) target = $region20
        $region19: #{lenet_forward.3} parent=11 // pred_region
          _
        $region20: #{lenet_forward.3} parent=11 // pred_fallthru
          _
      $region12: #{lenet_forward.3} parent=5 // pred_fallthru
        _
      %p124 = scmp.lt.s32.totalorder %s9, 2
      // Predicated region
      $region21: #{lenet_forward.3} parent=5 // pred_check
        %p125 = pneg %p124
      $region22: #{lenet_forward.3} parent=5 // pred_check_branch
        %127 = sbr.rel (%p125) target = $region24
      $region23: #{lenet_forward.3} parent=5 // pred_region
        // Predicated region
        $region25: #{lenet_forward.3} parent=23 // pred_check
          %p128 = pneg %p29
        $region26: #{lenet_forward.3} parent=23 // pred_check_branch
          %130 = sbr.rel (%p128) target = $region28
        $region27: #{lenet_forward.3} parent=23 // pred_region
          %s131 = sand.u32 %s19, 1
          %s132 = sand.u32 %s19, 1
          %s133 = smul.addr %s132, 400
          %s134 = scalar_lea.vmem [#allocation2], %s133
          %s135 = smul.u32 25, %s9
          %s136 = smul.addr %s135, 4
          %s137 = scalar_lea.vmem %s0, %s136
          // Predicated region
          $region29: #{lenet_forward.3} parent=27 // pred_check
            _
          $region30: #{lenet_forward.3} parent=27 // pred_check_branch
            %139 = sbr.rel (0) target = $region32
          $region31: #{lenet_forward.3} parent=27 // pred_region
            // Predicated region
            $region33: #{lenet_forward.3} parent=31 // pred_check
              _
            $region34: #{lenet_forward.3} parent=31 // pred_check_branch
              %141 = sbr.rel target = $region36
            $region35: #{lenet_forward.3} parent=31 // pred_region
              // Predicated region
              $region48: #{lenet_forward.3} parent=35 // pred_check
                _
              $region49: #{lenet_forward.3} parent=35 // pred_check_branch
                %355 = sbr.rel (0) target = $region51
              $region50: #{lenet_forward.3} parent=35 // pred_region
                loop: start=0, step=1, limit=1
                $region52: #{lenet_forward.3} parent=50 // loop_pre_header
                  _
                $region53: #{lenet_forward.3} parent=50 // loop_header
                  %s357 = sphi 0, %s361
                  %p358 = scmp.ge.s32.totalorder %s357, 1
                  %s362 = sphi %s137, %s137
                  %s363 = sphi %s134, %s134
                $region54: #{lenet_forward.3} parent=50 // loop_header_branch
                  %360 = sbr.rel (%p358) target = $region58
                $region55: #{lenet_forward.3} parent=50 // loop_body
                  _
                $region56: #{lenet_forward.3} parent=50 // loop_footer
                  %s361 = sadd.s32 1, %s357
                $region57: #{lenet_forward.3} parent=50 // loop_footer_branch
                  %356 = sbr.rel target = $region53
                $region58: #{lenet_forward.3} parent=50 // loop_exit
                  _
                %s365 = ssub.s32 16, 1
                loop: start=0, step=1, limit=1
                $region59: #{lenet_forward.3} parent=50 // loop_pre_header
                  _
                $region60: #{lenet_forward.3} parent=50 // loop_header
                  %s367 = sphi 0, %s371
                  %p368 = scmp.ge.s32.totalorder %s367, 1
                  %s372 = sphi %s137, %s137
                  %s373 = sphi %s134, %s134
                $region61: #{lenet_forward.3} parent=50 // loop_header_branch
                  %370 = sbr.rel (%p368) target = $region65
                $region62: #{lenet_forward.3} parent=50 // loop_body
                  %v374 = vld [vmem:[%s372] sm:%s365]
                  %375 = vst [vmem:[%s373] sm:%s365] %v374
                  %v376 = vld [vmem:[%s372 + $0x4] sm:%s365]
                  %377 = vst [vmem:[%s373 + $0x4] sm:%s365] %v376
                  %v378 = vld [vmem:[%s372 + $0x8] sm:%s365]
                  %379 = vst [vmem:[%s373 + $0x8] sm:%s365] %v378
                  %v380 = vld [vmem:[%s372 + $0xc] sm:%s365]
                  %381 = vst [vmem:[%s373 + $0xc] sm:%s365] %v380
                  %v382 = vld [vmem:[%s372 + $0x10] sm:%s365]
                  %383 = vst [vmem:[%s373 + $0x10] sm:%s365] %v382
                  %v384 = vld [vmem:[%s372 + $0x14] sm:%s365]
                  %385 = vst [vmem:[%s373 + $0x14] sm:%s365] %v384
                  %v386 = vld [vmem:[%s372 + $0x18] sm:%s365]
                  %387 = vst [vmem:[%s373 + $0x18] sm:%s365] %v386
                  %v388 = vld [vmem:[%s372 + $0x1c] sm:%s365]
                  %389 = vst [vmem:[%s373 + $0x1c] sm:%s365] %v388
                  %v390 = vld [vmem:[%s372 + $0x20] sm:%s365]
                  %391 = vst [vmem:[%s373 + $0x20] sm:%s365] %v390
                  %v392 = vld [vmem:[%s372 + $0x24] sm:%s365]
                  %393 = vst [vmem:[%s373 + $0x24] sm:%s365] %v392
                  %v394 = vld [vmem:[%s372 + $0x28] sm:%s365]
                  %395 = vst [vmem:[%s373 + $0x28] sm:%s365] %v394
                  %v396 = vld [vmem:[%s372 + $0x2c] sm:%s365]
                  %397 = vst [vmem:[%s373 + $0x2c] sm:%s365] %v396
                  %v398 = vld [vmem:[%s372 + $0x30] sm:%s365]
                  %399 = vst [vmem:[%s373 + $0x30] sm:%s365] %v398
                  %v400 = vld [vmem:[%s372 + $0x34] sm:%s365]
                  %401 = vst [vmem:[%s373 + $0x34] sm:%s365] %v400
                  %v402 = vld [vmem:[%s372 + $0x38] sm:%s365]
                  %403 = vst [vmem:[%s373 + $0x38] sm:%s365] %v402
                  %v404 = vld [vmem:[%s372 + $0x3c] sm:%s365]
                  %405 = vst [vmem:[%s373 + $0x3c] sm:%s365] %v404
                  %v406 = vld [vmem:[%s372 + $0x40] sm:%s365]
                  %407 = vst [vmem:[%s373 + $0x40] sm:%s365] %v406
                  %v408 = vld [vmem:[%s372 + $0x44] sm:%s365]
                  %409 = vst [vmem:[%s373 + $0x44] sm:%s365] %v408
                  %v410 = vld [vmem:[%s372 + $0x48] sm:%s365]
                  %411 = vst [vmem:[%s373 + $0x48] sm:%s365] %v410
                  %v412 = vld [vmem:[%s372 + $0x4c] sm:%s365]
                  %413 = vst [vmem:[%s373 + $0x4c] sm:%s365] %v412
                  %v414 = vld [vmem:[%s372 + $0x50] sm:%s365]
                  %415 = vst [vmem:[%s373 + $0x50] sm:%s365] %v414
                  %v416 = vld [vmem:[%s372 + $0x54] sm:%s365]
                  %417 = vst [vmem:[%s373 + $0x54] sm:%s365] %v416
                  %v418 = vld [vmem:[%s372 + $0x58] sm:%s365]
                  %419 = vst [vmem:[%s373 + $0x58] sm:%s365] %v418
                  %v420 = vld [vmem:[%s372 + $0x5c] sm:%s365]
                  %421 = vst [vmem:[%s373 + $0x5c] sm:%s365] %v420
                  %v422 = vld [vmem:[%s372 + $0x60] sm:%s365]
                  %423 = vst [vmem:[%s373 + $0x60] sm:%s365] %v422
                  %v424 = vld [vmem:[%s372 + $0xc8] sm:%s365]
                  %425 = vst [vmem:[%s373 + $0x64] sm:%s365] %v424
                  %v426 = vld [vmem:[%s372 + $0xcc] sm:%s365]
                  %427 = vst [vmem:[%s373 + $0x68] sm:%s365] %v426
                  %v428 = vld [vmem:[%s372 + $0xd0] sm:%s365]
                  %429 = vst [vmem:[%s373 + $0x6c] sm:%s365] %v428
                  %v430 = vld [vmem:[%s372 + $0xd4] sm:%s365]
                  %431 = vst [vmem:[%s373 + $0x70] sm:%s365] %v430
                  %v432 = vld [vmem:[%s372 + $0xd8] sm:%s365]
                  %433 = vst [vmem:[%s373 + $0x74] sm:%s365] %v432
                  %v434 = vld [vmem:[%s372 + $0xdc] sm:%s365]
                  %435 = vst [vmem:[%s373 + $0x78] sm:%s365] %v434
                  %v436 = vld [vmem:[%s372 + $0xe0] sm:%s365]
                  %437 = vst [vmem:[%s373 + $0x7c] sm:%s365] %v436
                  %v438 = vld [vmem:[%s372 + $0xe4] sm:%s365]
                  %439 = vst [vmem:[%s373 + $0x80] sm:%s365] %v438
                  %v440 = vld [vmem:[%s372 + $0xe8] sm:%s365]
                  %441 = vst [vmem:[%s373 + $0x84] sm:%s365] %v440
                  %v442 = vld [vmem:[%s372 + $0xec] sm:%s365]
                  %443 = vst [vmem:[%s373 + $0x88] sm:%s365] %v442
                  %v444 = vld [vmem:[%s372 + $0xf0] sm:%s365]
                  %445 = vst [vmem:[%s373 + $0x8c] sm:%s365] %v444
                  %v446 = vld [vmem:[%s372 + $0xf4] sm:%s365]
                  %447 = vst [vmem:[%s373 + $0x90] sm:%s365] %v446
                  %v448 = vld [vmem:[%s372 + $0xf8] sm:%s365]
                  %449 = vst [vmem:[%s373 + $0x94] sm:%s365] %v448
                  %v450 = vld [vmem:[%s372 + $0xfc] sm:%s365]
                  %451 = vst [vmem:[%s373 + $0x98] sm:%s365] %v450
                  %v452 = vld [vmem:[%s372 + $0x100] sm:%s365]
                  %453 = vst [vmem:[%s373 + $0x9c] sm:%s365] %v452
                  %v454 = vld [vmem:[%s372 + $0x104] sm:%s365]
                  %455 = vst [vmem:[%s373 + $0xa0] sm:%s365] %v454
                  %v456 = vld [vmem:[%s372 + $0x108] sm:%s365]
                  %457 = vst [vmem:[%s373 + $0xa4] sm:%s365] %v456
                  %v458 = vld [vmem:[%s372 + $0x10c] sm:%s365]
                  %459 = vst [vmem:[%s373 + $0xa8] sm:%s365] %v458
                  %v460 = vld [vmem:[%s372 + $0x110] sm:%s365]
                  %461 = vst [vmem:[%s373 + $0xac] sm:%s365] %v460
                  %v462 = vld [vmem:[%s372 + $0x114] sm:%s365]
                  %463 = vst [vmem:[%s373 + $0xb0] sm:%s365] %v462
                  %v464 = vld [vmem:[%s372 + $0x118] sm:%s365]
                  %465 = vst [vmem:[%s373 + $0xb4] sm:%s365] %v464
                  %v466 = vld [vmem:[%s372 + $0x11c] sm:%s365]
                  %467 = vst [vmem:[%s373 + $0xb8] sm:%s365] %v466
                  %v468 = vld [vmem:[%s372 + $0x120] sm:%s365]
                  %469 = vst [vmem:[%s373 + $0xbc] sm:%s365] %v468
                  %v470 = vld [vmem:[%s372 + $0x124] sm:%s365]
                  %471 = vst [vmem:[%s373 + $0xc0] sm:%s365] %v470
                  %v472 = vld [vmem:[%s372 + $0x128] sm:%s365]
                  %473 = vst [vmem:[%s373 + $0xc4] sm:%s365] %v472
                  %v474 = vld [vmem:[%s372 + $0x190] sm:%s365]
                  %475 = vst [vmem:[%s373 + $0xc8] sm:%s365] %v474
                  %v476 = vld [vmem:[%s372 + $0x194] sm:%s365]
                  %477 = vst [vmem:[%s373 + $0xcc] sm:%s365] %v476
                  %v478 = vld [vmem:[%s372 + $0x198] sm:%s365]
                  %479 = vst [vmem:[%s373 + $0xd0] sm:%s365] %v478
                  %v480 = vld [vmem:[%s372 + $0x19c] sm:%s365]
                  %481 = vst [vmem:[%s373 + $0xd4] sm:%s365] %v480
                  %v482 = vld [vmem:[%s372 + $0x1a0] sm:%s365]
                  %483 = vst [vmem:[%s373 + $0xd8] sm:%s365] %v482
                  %v484 = vld [vmem:[%s372 + $0x1a4] sm:%s365]
                  %485 = vst [vmem:[%s373 + $0xdc] sm:%s365] %v484
                  %v486 = vld [vmem:[%s372 + $0x1a8] sm:%s365]
                  %487 = vst [vmem:[%s373 + $0xe0] sm:%s365] %v486
                  %v488 = vld [vmem:[%s372 + $0x1ac] sm:%s365]
                  %489 = vst [vmem:[%s373 + $0xe4] sm:%s365] %v488
                  %v490 = vld [vmem:[%s372 + $0x1b0] sm:%s365]
                  %491 = vst [vmem:[%s373 + $0xe8] sm:%s365] %v490
                  %v492 = vld [vmem:[%s372 + $0x1b4] sm:%s365]
                  %493 = vst [vmem:[%s373 + $0xec] sm:%s365] %v492
                  %v494 = vld [vmem:[%s372 + $0x1b8] sm:%s365]
                  %495 = vst [vmem:[%s373 + $0xf0] sm:%s365] %v494
                  %v496 = vld [vmem:[%s372 + $0x1bc] sm:%s365]
                  %497 = vst [vmem:[%s373 + $0xf4] sm:%s365] %v496
                  %v498 = vld [vmem:[%s372 + $0x1c0] sm:%s365]
                  %499 = vst [vmem:[%s373 + $0xf8] sm:%s365] %v498
                  %v500 = vld [vmem:[%s372 + $0x1c4] sm:%s365]
                  %501 = vst [vmem:[%s373 + $0xfc] sm:%s365] %v500
                  %v502 = vld [vmem:[%s372 + $0x1c8] sm:%s365]
                  %503 = vst [vmem:[%s373 + $0x100] sm:%s365] %v502
                  %v504 = vld [vmem:[%s372 + $0x1cc] sm:%s365]
                  %505 = vst [vmem:[%s373 + $0x104] sm:%s365] %v504
                  %v506 = vld [vmem:[%s372 + $0x1d0] sm:%s365]
                  %507 = vst [vmem:[%s373 + $0x108] sm:%s365] %v506
                  %v508 = vld [vmem:[%s372 + $0x1d4] sm:%s365]
                  %509 = vst [vmem:[%s373 + $0x10c] sm:%s365] %v508
                  %v510 = vld [vmem:[%s372 + $0x1d8] sm:%s365]
                  %511 = vst [vmem:[%s373 + $0x110] sm:%s365] %v510
                  %v512 = vld [vmem:[%s372 + $0x1dc] sm:%s365]
                  %513 = vst [vmem:[%s373 + $0x114] sm:%s365] %v512
                  %v514 = vld [vmem:[%s372 + $0x1e0] sm:%s365]
                  %515 = vst [vmem:[%s373 + $0x118] sm:%s365] %v514
                  %v516 = vld [vmem:[%s372 + $0x1e4] sm:%s365]
                  %517 = vst [vmem:[%s373 + $0x11c] sm:%s365] %v516
                  %v518 = vld [vmem:[%s372 + $0x1e8] sm:%s365]
                  %519 = vst [vmem:[%s373 + $0x120] sm:%s365] %v518
                  %v520 = vld [vmem:[%s372 + $0x1ec] sm:%s365]
                  %521 = vst [vmem:[%s373 + $0x124] sm:%s365] %v520
                  %v522 = vld [vmem:[%s372 + $0x1f0] sm:%s365]
                  %523 = vst [vmem:[%s373 + $0x128] sm:%s365] %v522
                  %v524 = vld [vmem:[%s372 + $0x258] sm:%s365]
                  %525 = vst [vmem:[%s373 + $0x12c] sm:%s365] %v524
                  %v526 = vld [vmem:[%s372 + $0x25c] sm:%s365]
                  %527 = vst [vmem:[%s373 + $0x130] sm:%s365] %v526
                  %v528 = vld [vmem:[%s372 + $0x260] sm:%s365]
                  %529 = vst [vmem:[%s373 + $0x134] sm:%s365] %v528
                  %v530 = vld [vmem:[%s372 + $0x264] sm:%s365]
                  %531 = vst [vmem:[%s373 + $0x138] sm:%s365] %v530
                  %v532 = vld [vmem:[%s372 + $0x268] sm:%s365]
                  %533 = vst [vmem:[%s373 + $0x13c] sm:%s365] %v532
                  %v534 = vld [vmem:[%s372 + $0x26c] sm:%s365]
                  %535 = vst [vmem:[%s373 + $0x140] sm:%s365] %v534
                  %v536 = vld [vmem:[%s372 + $0x270] sm:%s365]
                  %537 = vst [vmem:[%s373 + $0x144] sm:%s365] %v536
                  %v538 = vld [vmem:[%s372 + $0x274] sm:%s365]
                  %539 = vst [vmem:[%s373 + $0x148] sm:%s365] %v538
                  %v540 = vld [vmem:[%s372 + $0x278] sm:%s365]
                  %541 = vst [vmem:[%s373 + $0x14c] sm:%s365] %v540
                  %v542 = vld [vmem:[%s372 + $0x27c] sm:%s365]
                  %543 = vst [vmem:[%s373 + $0x150] sm:%s365] %v542
                  %v544 = vld [vmem:[%s372 + $0x280] sm:%s365]
                  %545 = vst [vmem:[%s373 + $0x154] sm:%s365] %v544
                  %v546 = vld [vmem:[%s372 + $0x284] sm:%s365]
                  %547 = vst [vmem:[%s373 + $0x158] sm:%s365] %v546
                  %v548 = vld [vmem:[%s372 + $0x288] sm:%s365]
                  %549 = vst [vmem:[%s373 + $0x15c] sm:%s365] %v548
                  %v550 = vld [vmem:[%s372 + $0x28c] sm:%s365]
                  %551 = vst [vmem:[%s373 + $0x160] sm:%s365] %v550
                  %v552 = vld [vmem:[%s372 + $0x290] sm:%s365]
                  %553 = vst [vmem:[%s373 + $0x164] sm:%s365] %v552
                  %v554 = vld [vmem:[%s372 + $0x294] sm:%s365]
                  %555 = vst [vmem:[%s373 + $0x168] sm:%s365] %v554
                  %v556 = vld [vmem:[%s372 + $0x298] sm:%s365]
                  %557 = vst [vmem:[%s373 + $0x16c] sm:%s365] %v556
                  %v558 = vld [vmem:[%s372 + $0x29c] sm:%s365]
                  %559 = vst [vmem:[%s373 + $0x170] sm:%s365] %v558
                  %v560 = vld [vmem:[%s372 + $0x2a0] sm:%s365]
                  %561 = vst [vmem:[%s373 + $0x174] sm:%s365] %v560
                  %v562 = vld [vmem:[%s372 + $0x2a4] sm:%s365]
                  %563 = vst [vmem:[%s373 + $0x178] sm:%s365] %v562
                  %v564 = vld [vmem:[%s372 + $0x2a8] sm:%s365]
                  %565 = vst [vmem:[%s373 + $0x17c] sm:%s365] %v564
                  %v566 = vld [vmem:[%s372 + $0x2ac] sm:%s365]
                  %567 = vst [vmem:[%s373 + $0x180] sm:%s365] %v566
                  %v568 = vld [vmem:[%s372 + $0x2b0] sm:%s365]
                  %569 = vst [vmem:[%s373 + $0x184] sm:%s365] %v568
                  %v570 = vld [vmem:[%s372 + $0x2b4] sm:%s365]
                  %571 = vst [vmem:[%s373 + $0x188] sm:%s365] %v570
                  %v572 = vld [vmem:[%s372 + $0x2b8] sm:%s365]
                  %573 = vst [vmem:[%s373 + $0x18c] sm:%s365] %v572
                $region63: #{lenet_forward.3} parent=50 // loop_footer
                  %s371 = sadd.s32 1, %s367
                $region64: #{lenet_forward.3} parent=50 // loop_footer_branch
                  %366 = sbr.rel target = $region60
                $region65: #{lenet_forward.3} parent=50 // loop_exit
                  _
              $region51: #{lenet_forward.3} parent=35 // pred_fallthru
                _
            $region36: #{lenet_forward.3} parent=31 // pred_fallthru
              _
            // Predicated region
            $region37: #{lenet_forward.3} parent=31 // pred_check
              _
            $region38: #{lenet_forward.3} parent=31 // pred_check_branch
              %143 = sbr.rel (0) target = $region40
            $region39: #{lenet_forward.3} parent=31 // pred_region
              %s145 = ssub.s32 16, 1
              loop: start=0, step=1, limit=1
              $region41: #{lenet_forward.3} parent=39 // loop_pre_header
                _
              $region42: #{lenet_forward.3} parent=39 // loop_header
                %s147 = sphi 0, %s151
                %p148 = scmp.ge.s32.totalorder %s147, 1
                %s152 = sphi %s137, %s137
                %s153 = sphi %s134, %s134
              $region43: #{lenet_forward.3} parent=39 // loop_header_branch
                %150 = sbr.rel (%p148) target = $region47
              $region44: #{lenet_forward.3} parent=39 // loop_body
                %v154 = vld [vmem:[%s152] sm:%s145]
                %155 = vst [vmem:[%s153] sm:%s145] %v154
                %v156 = vld [vmem:[%s152 + $0x4] sm:%s145]
                %157 = vst [vmem:[%s153 + $0x4] sm:%s145] %v156
                %v158 = vld [vmem:[%s152 + $0x8] sm:%s145]
                %159 = vst [vmem:[%s153 + $0x8] sm:%s145] %v158
                %v160 = vld [vmem:[%s152 + $0xc] sm:%s145]
                %161 = vst [vmem:[%s153 + $0xc] sm:%s145] %v160
                %v162 = vld [vmem:[%s152 + $0x10] sm:%s145]
                %163 = vst [vmem:[%s153 + $0x10] sm:%s145] %v162
                %v164 = vld [vmem:[%s152 + $0x14] sm:%s145]
                %165 = vst [vmem:[%s153 + $0x14] sm:%s145] %v164
                %v166 = vld [vmem:[%s152 + $0x18] sm:%s145]
                %167 = vst [vmem:[%s153 + $0x18] sm:%s145] %v166
                %v168 = vld [vmem:[%s152 + $0x1c] sm:%s145]
                %169 = vst [vmem:[%s153 + $0x1c] sm:%s145] %v168
                %v170 = vld [vmem:[%s152 + $0x20] sm:%s145]
                %171 = vst [vmem:[%s153 + $0x20] sm:%s145] %v170
                %v172 = vld [vmem:[%s152 + $0x24] sm:%s145]
                %173 = vst [vmem:[%s153 + $0x24] sm:%s145] %v172
                %v174 = vld [vmem:[%s152 + $0x28] sm:%s145]
                %175 = vst [vmem:[%s153 + $0x28] sm:%s145] %v174
                %v176 = vld [vmem:[%s152 + $0x2c] sm:%s145]
                %177 = vst [vmem:[%s153 + $0x2c] sm:%s145] %v176
                %v178 = vld [vmem:[%s152 + $0x30] sm:%s145]
                %179 = vst [vmem:[%s153 + $0x30] sm:%s145] %v178
                %v180 = vld [vmem:[%s152 + $0x34] sm:%s145]
                %181 = vst [vmem:[%s153 + $0x34] sm:%s145] %v180
                %v182 = vld [vmem:[%s152 + $0x38] sm:%s145]
                %183 = vst [vmem:[%s153 + $0x38] sm:%s145] %v182
                %v184 = vld [vmem:[%s152 + $0x3c] sm:%s145]
                %185 = vst [vmem:[%s153 + $0x3c] sm:%s145] %v184
                %v186 = vld [vmem:[%s152 + $0x40] sm:%s145]
                %187 = vst [vmem:[%s153 + $0x40] sm:%s145] %v186
                %v188 = vld [vmem:[%s152 + $0x44] sm:%s145]
                %189 = vst [vmem:[%s153 + $0x44] sm:%s145] %v188
                %v190 = vld [vmem:[%s152 + $0x48] sm:%s145]
                %191 = vst [vmem:[%s153 + $0x48] sm:%s145] %v190
                %v192 = vld [vmem:[%s152 + $0x4c] sm:%s145]
                %193 = vst [vmem:[%s153 + $0x4c] sm:%s145] %v192
                %v194 = vld [vmem:[%s152 + $0x50] sm:%s145]
                %195 = vst [vmem:[%s153 + $0x50] sm:%s145] %v194
                %v196 = vld [vmem:[%s152 + $0x54] sm:%s145]
                %197 = vst [vmem:[%s153 + $0x54] sm:%s145] %v196
                %v198 = vld [vmem:[%s152 + $0x58] sm:%s145]
                %199 = vst [vmem:[%s153 + $0x58] sm:%s145] %v198
                %v200 = vld [vmem:[%s152 + $0x5c] sm:%s145]
                %201 = vst [vmem:[%s153 + $0x5c] sm:%s145] %v200
                %v202 = vld [vmem:[%s152 + $0x60] sm:%s145]
                %203 = vst [vmem:[%s153 + $0x60] sm:%s145] %v202
                %v204 = vld [vmem:[%s152 + $0xc8] sm:%s145]
                %205 = vst [vmem:[%s153 + $0x64] sm:%s145] %v204
                %v206 = vld [vmem:[%s152 + $0xcc] sm:%s145]
                %207 = vst [vmem:[%s153 + $0x68] sm:%s145] %v206
                %v208 = vld [vmem:[%s152 + $0xd0] sm:%s145]
                %209 = vst [vmem:[%s153 + $0x6c] sm:%s145] %v208
                %v210 = vld [vmem:[%s152 + $0xd4] sm:%s145]
                %211 = vst [vmem:[%s153 + $0x70] sm:%s145] %v210
                %v212 = vld [vmem:[%s152 + $0xd8] sm:%s145]
                %213 = vst [vmem:[%s153 + $0x74] sm:%s145] %v212
                %v214 = vld [vmem:[%s152 + $0xdc] sm:%s145]
                %215 = vst [vmem:[%s153 + $0x78] sm:%s145] %v214
                %v216 = vld [vmem:[%s152 + $0xe0] sm:%s145]
                %217 = vst [vmem:[%s153 + $0x7c] sm:%s145] %v216
                %v218 = vld [vmem:[%s152 + $0xe4] sm:%s145]
                %219 = vst [vmem:[%s153 + $0x80] sm:%s145] %v218
                %v220 = vld [vmem:[%s152 + $0xe8] sm:%s145]
                %221 = vst [vmem:[%s153 + $0x84] sm:%s145] %v220
                %v222 = vld [vmem:[%s152 + $0xec] sm:%s145]
                %223 = vst [vmem:[%s153 + $0x88] sm:%s145] %v222
                %v224 = vld [vmem:[%s152 + $0xf0] sm:%s145]
                %225 = vst [vmem:[%s153 + $0x8c] sm:%s145] %v224
                %v226 = vld [vmem:[%s152 + $0xf4] sm:%s145]
                %227 = vst [vmem:[%s153 + $0x90] sm:%s145] %v226
                %v228 = vld [vmem:[%s152 + $0xf8] sm:%s145]
                %229 = vst [vmem:[%s153 + $0x94] sm:%s145] %v228
                %v230 = vld [vmem:[%s152 + $0xfc] sm:%s145]
                %231 = vst [vmem:[%s153 + $0x98] sm:%s145] %v230
                %v232 = vld [vmem:[%s152 + $0x100] sm:%s145]
                %233 = vst [vmem:[%s153 + $0x9c] sm:%s145] %v232
                %v234 = vld [vmem:[%s152 + $0x104] sm:%s145]
                %235 = vst [vmem:[%s153 + $0xa0] sm:%s145] %v234
                %v236 = vld [vmem:[%s152 + $0x108] sm:%s145]
                %237 = vst [vmem:[%s153 + $0xa4] sm:%s145] %v236
                %v238 = vld [vmem:[%s152 + $0x10c] sm:%s145]
                %239 = vst [vmem:[%s153 + $0xa8] sm:%s145] %v238
                %v240 = vld [vmem:[%s152 + $0x110] sm:%s145]
                %241 = vst [vmem:[%s153 + $0xac] sm:%s145] %v240
                %v242 = vld [vmem:[%s152 + $0x114] sm:%s145]
                %243 = vst [vmem:[%s153 + $0xb0] sm:%s145] %v242
                %v244 = vld [vmem:[%s152 + $0x118] sm:%s145]
                %245 = vst [vmem:[%s153 + $0xb4] sm:%s145] %v244
                %v246 = vld [vmem:[%s152 + $0x11c] sm:%s145]
                %247 = vst [vmem:[%s153 + $0xb8] sm:%s145] %v246
                %v248 = vld [vmem:[%s152 + $0x120] sm:%s145]
                %249 = vst [vmem:[%s153 + $0xbc] sm:%s145] %v248
                %v250 = vld [vmem:[%s152 + $0x124] sm:%s145]
                %251 = vst [vmem:[%s153 + $0xc0] sm:%s145] %v250
                %v252 = vld [vmem:[%s152 + $0x128] sm:%s145]
                %253 = vst [vmem:[%s153 + $0xc4] sm:%s145] %v252
                %v254 = vld [vmem:[%s152 + $0x190] sm:%s145]
                %255 = vst [vmem:[%s153 + $0xc8] sm:%s145] %v254
                %v256 = vld [vmem:[%s152 + $0x194] sm:%s145]
                %257 = vst [vmem:[%s153 + $0xcc] sm:%s145] %v256
                %v258 = vld [vmem:[%s152 + $0x198] sm:%s145]
                %259 = vst [vmem:[%s153 + $0xd0] sm:%s145] %v258
                %v260 = vld [vmem:[%s152 + $0x19c] sm:%s145]
                %261 = vst [vmem:[%s153 + $0xd4] sm:%s145] %v260
                %v262 = vld [vmem:[%s152 + $0x1a0] sm:%s145]
                %263 = vst [vmem:[%s153 + $0xd8] sm:%s145] %v262
                %v264 = vld [vmem:[%s152 + $0x1a4] sm:%s145]
                %265 = vst [vmem:[%s153 + $0xdc] sm:%s145] %v264
                %v266 = vld [vmem:[%s152 + $0x1a8] sm:%s145]
                %267 = vst [vmem:[%s153 + $0xe0] sm:%s145] %v266
                %v268 = vld [vmem:[%s152 + $0x1ac] sm:%s145]
                %269 = vst [vmem:[%s153 + $0xe4] sm:%s145] %v268
                %v270 = vld [vmem:[%s152 + $0x1b0] sm:%s145]
                %271 = vst [vmem:[%s153 + $0xe8] sm:%s145] %v270
                %v272 = vld [vmem:[%s152 + $0x1b4] sm:%s145]
                %273 = vst [vmem:[%s153 + $0xec] sm:%s145] %v272
                %v274 = vld [vmem:[%s152 + $0x1b8] sm:%s145]
                %275 = vst [vmem:[%s153 + $0xf0] sm:%s145] %v274
                %v276 = vld [vmem:[%s152 + $0x1bc] sm:%s145]
                %277 = vst [vmem:[%s153 + $0xf4] sm:%s145] %v276
                %v278 = vld [vmem:[%s152 + $0x1c0] sm:%s145]
                %279 = vst [vmem:[%s153 + $0xf8] sm:%s145] %v278
                %v280 = vld [vmem:[%s152 + $0x1c4] sm:%s145]
                %281 = vst [vmem:[%s153 + $0xfc] sm:%s145] %v280
                %v282 = vld [vmem:[%s152 + $0x1c8] sm:%s145]
                %283 = vst [vmem:[%s153 + $0x100] sm:%s145] %v282
                %v284 = vld [vmem:[%s152 + $0x1cc] sm:%s145]
                %285 = vst [vmem:[%s153 + $0x104] sm:%s145] %v284
                %v286 = vld [vmem:[%s152 + $0x1d0] sm:%s145]
                %287 = vst [vmem:[%s153 + $0x108] sm:%s145] %v286
                %v288 = vld [vmem:[%s152 + $0x1d4] sm:%s145]
                %289 = vst [vmem:[%s153 + $0x10c] sm:%s145] %v288
                %v290 = vld [vmem:[%s152 + $0x1d8] sm:%s145]
                %291 = vst [vmem:[%s153 + $0x110] sm:%s145] %v290
                %v292 = vld [vmem:[%s152 + $0x1dc] sm:%s145]
                %293 = vst [vmem:[%s153 + $0x114] sm:%s145] %v292
                %v294 = vld [vmem:[%s152 + $0x1e0] sm:%s145]
                %295 = vst [vmem:[%s153 + $0x118] sm:%s145] %v294
                %v296 = vld [vmem:[%s152 + $0x1e4] sm:%s145]
                %297 = vst [vmem:[%s153 + $0x11c] sm:%s145] %v296
                %v298 = vld [vmem:[%s152 + $0x1e8] sm:%s145]
                %299 = vst [vmem:[%s153 + $0x120] sm:%s145] %v298
                %v300 = vld [vmem:[%s152 + $0x1ec] sm:%s145]
                %301 = vst [vmem:[%s153 + $0x124] sm:%s145] %v300
                %v302 = vld [vmem:[%s152 + $0x1f0] sm:%s145]
                %303 = vst [vmem:[%s153 + $0x128] sm:%s145] %v302
                %v304 = vld [vmem:[%s152 + $0x258] sm:%s145]
                %305 = vst [vmem:[%s153 + $0x12c] sm:%s145] %v304
                %v306 = vld [vmem:[%s152 + $0x25c] sm:%s145]
                %307 = vst [vmem:[%s153 + $0x130] sm:%s145] %v306
                %v308 = vld [vmem:[%s152 + $0x260] sm:%s145]
                %309 = vst [vmem:[%s153 + $0x134] sm:%s145] %v308
                %v310 = vld [vmem:[%s152 + $0x264] sm:%s145]
                %311 = vst [vmem:[%s153 + $0x138] sm:%s145] %v310
                %v312 = vld [vmem:[%s152 + $0x268] sm:%s145]
                %313 = vst [vmem:[%s153 + $0x13c] sm:%s145] %v312
                %v314 = vld [vmem:[%s152 + $0x26c] sm:%s145]
                %315 = vst [vmem:[%s153 + $0x140] sm:%s145] %v314
                %v316 = vld [vmem:[%s152 + $0x270] sm:%s145]
                %317 = vst [vmem:[%s153 + $0x144] sm:%s145] %v316
                %v318 = vld [vmem:[%s152 + $0x274] sm:%s145]
                %319 = vst [vmem:[%s153 + $0x148] sm:%s145] %v318
                %v320 = vld [vmem:[%s152 + $0x278] sm:%s145]
                %321 = vst [vmem:[%s153 + $0x14c] sm:%s145] %v320
                %v322 = vld [vmem:[%s152 + $0x27c] sm:%s145]
                %323 = vst [vmem:[%s153 + $0x150] sm:%s145] %v322
                %v324 = vld [vmem:[%s152 + $0x280] sm:%s145]
                %325 = vst [vmem:[%s153 + $0x154] sm:%s145] %v324
                %v326 = vld [vmem:[%s152 + $0x284] sm:%s145]
                %327 = vst [vmem:[%s153 + $0x158] sm:%s145] %v326
                %v328 = vld [vmem:[%s152 + $0x288] sm:%s145]
                %329 = vst [vmem:[%s153 + $0x15c] sm:%s145] %v328
                %v330 = vld [vmem:[%s152 + $0x28c] sm:%s145]
                %331 = vst [vmem:[%s153 + $0x160] sm:%s145] %v330
                %v332 = vld [vmem:[%s152 + $0x290] sm:%s145]
                %333 = vst [vmem:[%s153 + $0x164] sm:%s145] %v332
                %v334 = vld [vmem:[%s152 + $0x294] sm:%s145]
                %335 = vst [vmem:[%s153 + $0x168] sm:%s145] %v334
                %v336 = vld [vmem:[%s152 + $0x298] sm:%s145]
                %337 = vst [vmem:[%s153 + $0x16c] sm:%s145] %v336
                %v338 = vld [vmem:[%s152 + $0x29c] sm:%s145]
                %339 = vst [vmem:[%s153 + $0x170] sm:%s145] %v338
                %v340 = vld [vmem:[%s152 + $0x2a0] sm:%s145]
                %341 = vst [vmem:[%s153 + $0x174] sm:%s145] %v340
                %v342 = vld [vmem:[%s152 + $0x2a4] sm:%s145]
                %343 = vst [vmem:[%s153 + $0x178] sm:%s145] %v342
                %v344 = vld [vmem:[%s152 + $0x2a8] sm:%s145]
                %345 = vst [vmem:[%s153 + $0x17c] sm:%s145] %v344
                %v346 = vld [vmem:[%s152 + $0x2ac] sm:%s145]
                %347 = vst [vmem:[%s153 + $0x180] sm:%s145] %v346
                %v348 = vld [vmem:[%s152 + $0x2b0] sm:%s145]
                %349 = vst [vmem:[%s153 + $0x184] sm:%s145] %v348
                %v350 = vld [vmem:[%s152 + $0x2b4] sm:%s145]
                %351 = vst [vmem:[%s153 + $0x188] sm:%s145] %v350
                %v352 = vld [vmem:[%s152 + $0x2b8] sm:%s145]
                %353 = vst [vmem:[%s153 + $0x18c] sm:%s145] %v352
              $region45: #{lenet_forward.3} parent=39 // loop_footer
                %s151 = sadd.s32 1, %s147
              $region46: #{lenet_forward.3} parent=39 // loop_footer_branch
                %146 = sbr.rel target = $region42
              $region47: #{lenet_forward.3} parent=39 // loop_exit
                _
            $region40: #{lenet_forward.3} parent=31 // pred_fallthru
              _
          $region32: #{lenet_forward.3} parent=27 // pred_fallthru
            _
          %574 = vnop
        $region28: #{lenet_forward.3} parent=23 // pred_fallthru
          _
      $region24: #{lenet_forward.3} parent=5 // pred_fallthru
        _
      %p575 = scmp.le.s32.totalorder 1, %s9
      %p576 = scmp.lt.s32.totalorder %s9, 3
      %p577 = pnand %p575, %p576
      %p578 = pneg %p577
      // Predicated region
      $region66: #{lenet_forward.3} parent=5 // pred_check
        _
      $region67: #{lenet_forward.3} parent=5 // pred_check_branch
        %580 = sbr.rel (%p577) target = $region69
      $region68: #{lenet_forward.3} parent=5 // pred_region
        %s581 = ssub.s32 %s9, 1
        %s582 = sand.u32 %s22, 1
        %s583 = sand.u32 %s22, 1
        %s584 = smul.addr %s583, 400
        %s585 = scalar_lea.vmem [#allocation2], %s584
        // Predicated region
        $region70: #{lenet_forward.3} parent=68 // pred_check
          %p586 = pneg %p35
        $region71: #{lenet_forward.3} parent=68 // pred_check_branch
          %588 = sbr.rel (%p586) target = $region73
        $region72: #{lenet_forward.3} parent=68 // pred_region
          _
        $region73: #{lenet_forward.3} parent=68 // pred_fallthru
          _
        %s589 = sand.u32 %s22, 1
        %s590 = sand.u32 %s22, 1
        %s591 = smul.addr %s590, 400
        %s592 = scalar_lea.vmem [#allocation2], %s591
        %p593 = pneg %p35
        %p594 = pneg %p32
        %p595 = pneg %p56
        %p596 = pneg %p53
        %p597 = pneg %p77
        %p598 = pneg %p74
        %p599 = pneg %p103
        %p600 = pneg %p100
        %s601 = smul.u32 25, %s14
        %p602 = scmp.lt.s32.totalorder %s601, 49
        %s603 = scalar_select %p602, %s601, 49
        %s604 = smul.addr %s603, 4
        %s605 = scalar_lea.vmem %s3, %s604
        %s606 = smul.u32 25, %s14
        %s607 = smul.u32 25, %s14
        %p608 = scmp.lt.s32.totalorder %s607, 49
        %s609 = scalar_select %p608, %s607, 49
        %s610 = smul.addr %s609, 4
        %s611 = scalar_lea.vmem %s3, %s610
        %s612 = smul.u32 25, %s14
        %v614 = vld [vmem:[%s1] sm:$0xf]
        %v615 = vld [vmem:[%s1 + $0x4] sm:$0xf]
        %v616 = vld [vmem:[%s1 + $0x8] sm:$0xf]
        %v617 = vld [vmem:[%s1 + $0xc] sm:$0xf]
        %v618 = vld [vmem:[%s1 + $0x10] sm:$0xf]
        %v619 = vld [vmem:[%s1 + $0x14] sm:$0xf]
        %v620 = vld [vmem:[%s1 + $0x18] sm:$0xf]
        %v621 = vld [vmem:[%s1 + $0x1c] sm:$0xf]
        %v622 = vld [vmem:[%s1 + $0x20] sm:$0xf]
        %v623 = vld [vmem:[%s1 + $0x24] sm:$0x3]
        %v624 = vld [vmem:[%s585] sm:$0xf]
        %v625 = vld [vmem:[%s585 + $0x4] sm:$0xf]
        %v626 = vld [vmem:[%s585 + $0x8] sm:$0xf]
        %v627 = vld [vmem:[%s585 + $0xc] sm:$0xf]
        %v628 = vld [vmem:[%s585 + $0x10] sm:$0xf]
        %v629 = vld [vmem:[%s585 + $0x14] sm:$0xf]
        %v630 = vld [vmem:[%s585 + $0x18] sm:$0xf]
        %v631 = vld [vmem:[%s585 + $0x1c] sm:$0xf]
        %v632 = vld [vmem:[%s585 + $0x20] sm:$0xf]
        %v633 = vld [vmem:[%s585 + $0x24] sm:$0xf]
        %v634 = vld [vmem:[%s585 + $0x28] sm:$0xf]
        %v635 = vld [vmem:[%s585 + $0x2c] sm:$0xf]
        %v636 = vld [vmem:[%s585 + $0x30] sm:$0xf]
        %v637 = vld [vmem:[%s585 + $0x34] sm:$0xf]
        %v638 = vld [vmem:[%s585 + $0x38] sm:$0xf]
        %v639 = vld [vmem:[%s585 + $0x3c] sm:$0xf]
        %v640 = vld [vmem:[%s585 + $0x40] sm:$0xf]
        %v641 = vld [vmem:[%s585 + $0x44] sm:$0xf]
        %v642 = vld [vmem:[%s585 + $0x48] sm:$0xf]
        %v643 = vld [vmem:[%s585 + $0x4c] sm:$0xf]
        %v644 = vld [vmem:[%s585 + $0x50] sm:$0xf]
        %v645 = vld [vmem:[%s585 + $0x54] sm:$0xf]
        %v646 = vld [vmem:[%s585 + $0x58] sm:$0xf]
        %v647 = vld [vmem:[%s585 + $0x5c] sm:$0xf]
        %v648 = vld [vmem:[%s585 + $0x60] sm:$0xf]
        %v674 = vunpack.c.l.b16 %v624
        %v675 = vunpack.c.l.b16 %v625
        %v676 = vunpack.c.l.b16 %v626
        %v677 = vunpack.c.l.b16 %v627
        %v678 = vunpack.c.l.b16 %v628
        %v679 = vunpack.c.l.b16 %v629
        %v680 = vunpack.c.l.b16 %v630
        %v681 = vunpack.c.l.b16 %v631
        %v682 = vunpack.c.l.b16 %v632
        %v683 = vunpack.c.l.b16 %v633
        %v684 = vunpack.c.l.b16 %v634
        %v685 = vunpack.c.l.b16 %v635
        %v686 = vunpack.c.l.b16 %v636
        %v687 = vunpack.c.l.b16 %v637
        %v688 = vunpack.c.l.b16 %v638
        %v689 = vunpack.c.l.b16 %v639
        %v690 = vunpack.c.l.b16 %v640
        %v691 = vunpack.c.l.b16 %v641
        %v692 = vunpack.c.l.b16 %v642
        %v693 = vunpack.c.l.b16 %v643
        %v694 = vunpack.c.l.b16 %v644
        %v695 = vunpack.c.l.b16 %v645
        %v696 = vunpack.c.l.b16 %v646
        %v697 = vunpack.c.l.b16 %v647
        %v698 = vunpack.c.l.b16 %v648
        %v699 = vpack.c.b16 %v675, %v674
        %v700 = vpack.c.b16 %v677, %v676
        %v701 = vpack.c.b16 %v679, %v678
        %v702 = vpack.c.b16 %v681, %v680
        %v703 = vpack.c.b16 %v683, %v682
        %v704 = vpack.c.b16 %v685, %v684
        %v705 = vpack.c.b16 %v687, %v686
        %v706 = vpack.c.b16 %v689, %v688
        %v707 = vpack.c.b16 %v691, %v690
        %v708 = vpack.c.b16 %v693, %v692
        %v709 = vpack.c.b16 %v695, %v694
        %v710 = vpack.c.b16 %v697, %v696
        %v711 = vpack.c.b16 %v698, %v698
        %v722 = vunpack.c.l.b16 %v614
        %v723 = vunpack.c.l.b16 %v615
        %v724 = vunpack.c.l.b16 %v616
        %v725 = vunpack.c.l.b16 %v617
        %v726 = vunpack.c.l.b16 %v618
        %v727 = vunpack.c.l.b16 %v619
        %v728 = vunpack.c.l.b16 %v620
        %v729 = vunpack.c.l.b16 %v621
        %v730 = vunpack.c.l.b16 %v622
        %v731 = vunpack.c.l.b16 %v623
        %v732 = vpack.c.b16 %v723, %v722
        %v733 = vpack.c.b16 %v725, %v724
        %v734 = vpack.c.b16 %v727, %v726
        %v735 = vpack.c.b16 %v729, %v728
        %v736 = vpack.c.b16 %v731, %v730
        %vm741 = vcmask 613376
        %v743 = vsel %vm741, %v699, 0
        %v746 = vsel %vm741, %v700, 0
        %v749 = vsel %vm741, %v701, 0
        %v752 = vsel %vm741, %v702, 0
        %v755 = vsel %vm741, %v703, 0
        %v758 = vsel %vm741, %v704, 0
        %v761 = vsel %vm741, %v705, 0
        %v764 = vsel %vm741, %v706, 0
        %v767 = vsel %vm741, %v707, 0
        %v770 = vsel %vm741, %v708, 0
        %v773 = vsel %vm741, %v709, 0
        %v776 = vsel %vm741, %v710, 0
        %v779 = vsel %vm741, %v711, 0
        %vm781 = vcmask 1044480
        %vm782 = vcmask 1045504
        %v783 = vsel %vm781, 4294967295, 65535
        %v784 = vsel %vm782, %v783, 0
        %v786 = vand.u32 %v736, %v784
        %788 = vmatpush.bf16.msra.mxu0 0
        %789 = vmatpush.bf16.msra.mxu0 0
        %790 = vmatpush.bf16.msra.mxu0 0
        %791 = vmatpush.bf16.msra.mxu0 %v786
        %792 = vmatpush.bf16.msra.mxu0 %v735
        %793 = vmatpush.bf16.msra.mxu0 %v734
        %794 = vmatpush.bf16.msra.mxu0 %v733
        %795 = vmatpush.bf16.msra.mxu0 %v732
        %796 = vmatmul.bf16.gmra.mxu0 %v743
        %v797 = vpop.f32.mrf.mxu0
        %v798 = vadd.f32 0.0, %v797
        %v799 = vpop.f32.mrf.mxu0
        %v800 = vadd.f32 0.0, %v799
        %801 = vmatmul.bf16.gmra.mxu0 %v746
        %v802 = vpop.f32.mrf.mxu0
        %v803 = vadd.f32 0.0, %v802
        %v804 = vpop.f32.mrf.mxu0
        %v805 = vadd.f32 0.0, %v804
        %806 = vmatmul.bf16.gmra.mxu0 %v749
        %v807 = vpop.f32.mrf.mxu0
        %v808 = vadd.f32 0.0, %v807
        %v809 = vpop.f32.mrf.mxu0
        %v810 = vadd.f32 0.0, %v809
        %811 = vmatmul.bf16.gmra.mxu0 %v752
        %v812 = vpop.f32.mrf.mxu0
        %v813 = vadd.f32 0.0, %v812
        %v814 = vpop.f32.mrf.mxu0
        %v815 = vadd.f32 0.0, %v814
        %816 = vmatmul.bf16.gmra.mxu0 %v755
        %v817 = vpop.f32.mrf.mxu0
        %v818 = vadd.f32 0.0, %v817
        %v819 = vpop.f32.mrf.mxu0
        %v820 = vadd.f32 0.0, %v819
        %821 = vmatmul.bf16.gmra.mxu0 %v758
        %v822 = vpop.f32.mrf.mxu0
        %v823 = vadd.f32 0.0, %v822
        %v824 = vpop.f32.mrf.mxu0
        %v825 = vadd.f32 0.0, %v824
        %826 = vmatmul.bf16.gmra.mxu0 %v761
        %v827 = vpop.f32.mrf.mxu0
        %v828 = vadd.f32 0.0, %v827
        %v829 = vpop.f32.mrf.mxu0
        %v830 = vadd.f32 0.0, %v829
        %831 = vmatmul.bf16.gmra.mxu0 %v764
        %v832 = vpop.f32.mrf.mxu0
        %v833 = vadd.f32 0.0, %v832
        %v834 = vpop.f32.mrf.mxu0
        %v835 = vadd.f32 0.0, %v834
        %836 = vmatmul.bf16.gmra.mxu0 %v767
        %v837 = vpop.f32.mrf.mxu0
        %v838 = vadd.f32 0.0, %v837
        %v839 = vpop.f32.mrf.mxu0
        %v840 = vadd.f32 0.0, %v839
        %841 = vmatmul.bf16.gmra.mxu0 %v770
        %v842 = vpop.f32.mrf.mxu0
        %v843 = vadd.f32 0.0, %v842
        %v844 = vpop.f32.mrf.mxu0
        %v845 = vadd.f32 0.0, %v844
        %846 = vmatmul.bf16.gmra.mxu0 %v773
        %v847 = vpop.f32.mrf.mxu0
        %v848 = vadd.f32 0.0, %v847
        %v849 = vpop.f32.mrf.mxu0
        %v850 = vadd.f32 0.0, %v849
        %851 = vmatmul.bf16.gmra.mxu0 %v776
        %v852 = vpop.f32.mrf.mxu0
        %v853 = vadd.f32 0.0, %v852
        %v854 = vpop.f32.mrf.mxu0
        %v855 = vadd.f32 0.0, %v854
        %856 = vmatmul.bf16.gmra.mxu0 %v779
        %v857 = vpop.f32.mrf.mxu0
        %v858 = vadd.f32 0.0, %v857
        %v859 = vpop.f32.mrf.mxu0
        %860 = vdwg.mxu0
        %s861 = scalar_lea.vmem %s585, 100 [#allocation2]
        %v862 = vld [vmem:[%s861] sm:$0xf]
        %v863 = vld [vmem:[%s861 + $0x4] sm:$0xf]
        %v864 = vld [vmem:[%s861 + $0x8] sm:$0xf]
        %v865 = vld [vmem:[%s861 + $0xc] sm:$0xf]
        %v866 = vld [vmem:[%s861 + $0x10] sm:$0xf]
        %v867 = vld [vmem:[%s861 + $0x14] sm:$0xf]
        %v868 = vld [vmem:[%s861 + $0x18] sm:$0xf]
        %v869 = vld [vmem:[%s861 + $0x1c] sm:$0xf]
        %v870 = vld [vmem:[%s861 + $0x20] sm:$0xf]
        %v871 = vld [vmem:[%s861 + $0x24] sm:$0xf]
        %v872 = vld [vmem:[%s861 + $0x28] sm:$0xf]
        %v873 = vld [vmem:[%s861 + $0x2c] sm:$0xf]
        %v874 = vld [vmem:[%s861 + $0x30] sm:$0xf]
        %v875 = vld [vmem:[%s861 + $0x34] sm:$0xf]
        %v876 = vld [vmem:[%s861 + $0x38] sm:$0xf]
        %v877 = vld [vmem:[%s861 + $0x3c] sm:$0xf]
        %v878 = vld [vmem:[%s861 + $0x40] sm:$0xf]
        %v879 = vld [vmem:[%s861 + $0x44] sm:$0xf]
        %v880 = vld [vmem:[%s861 + $0x48] sm:$0xf]
        %v881 = vld [vmem:[%s861 + $0x4c] sm:$0xf]
        %v882 = vld [vmem:[%s861 + $0x50] sm:$0xf]
        %v883 = vld [vmem:[%s861 + $0x54] sm:$0xf]
        %v884 = vld [vmem:[%s861 + $0x58] sm:$0xf]
        %v885 = vld [vmem:[%s861 + $0x5c] sm:$0xf]
        %v886 = vld [vmem:[%s861 + $0x60] sm:$0xf]
        %v912 = vunpack.c.l.b16 %v862
        %v913 = vunpack.c.l.b16 %v863
        %v914 = vunpack.c.l.b16 %v864
        %v915 = vunpack.c.l.b16 %v865
        %v916 = vunpack.c.l.b16 %v866
        %v917 = vunpack.c.l.b16 %v867
        %v918 = vunpack.c.l.b16 %v868
        %v919 = vunpack.c.l.b16 %v869
        %v920 = vunpack.c.l.b16 %v870
        %v921 = vunpack.c.l.b16 %v871
        %v922 = vunpack.c.l.b16 %v872
        %v923 = vunpack.c.l.b16 %v873
        %v924 = vunpack.c.l.b16 %v874
        %v925 = vunpack.c.l.b16 %v875
        %v926 = vunpack.c.l.b16 %v876
        %v927 = vunpack.c.l.b16 %v877
        %v928 = vunpack.c.l.b16 %v878
        %v929 = vunpack.c.l.b16 %v879
        %v930 = vunpack.c.l.b16 %v880
        %v931 = vunpack.c.l.b16 %v881
        %v932 = vunpack.c.l.b16 %v882
        %v933 = vunpack.c.l.b16 %v883
        %v934 = vunpack.c.l.b16 %v884
        %v935 = vunpack.c.l.b16 %v885
        %v936 = vunpack.c.l.b16 %v886
        %v937 = vpack.c.b16 %v913, %v912
        %v938 = vpack.c.b16 %v915, %v914
        %v939 = vpack.c.b16 %v917, %v916
        %v940 = vpack.c.b16 %v919, %v918
        %v941 = vpack.c.b16 %v921, %v920
        %v942 = vpack.c.b16 %v923, %v922
        %v943 = vpack.c.b16 %v925, %v924
        %v944 = vpack.c.b16 %v927, %v926
        %v945 = vpack.c.b16 %v929, %v928
        %v946 = vpack.c.b16 %v931, %v930
        %v947 = vpack.c.b16 %v933, %v932
        %v948 = vpack.c.b16 %v935, %v934
        %v949 = vpack.c.b16 %v936, %v936
        %v951 = vsel %vm741, %v937, 0
        %v954 = vsel %vm741, %v938, 0
        %v957 = vsel %vm741, %v939, 0
        %v960 = vsel %vm741, %v940, 0
        %v963 = vsel %vm741, %v941, 0
        %v966 = vsel %vm741, %v942, 0
        %v969 = vsel %vm741, %v943, 0
        %v972 = vsel %vm741, %v944, 0
        %v975 = vsel %vm741, %v945, 0
        %v978 = vsel %vm741, %v946, 0
        %v981 = vsel %vm741, %v947, 0
        %v984 = vsel %vm741, %v948, 0
        %v987 = vsel %vm741, %v949, 0
        %989 = vmatpush.bf16.msra.mxu0 0
        %990 = vmatpush.bf16.msra.mxu0 0
        %991 = vmatpush.bf16.msra.mxu0 0
        %992 = vmatpush.bf16.msra.mxu0 %v786
        %993 = vmatpush.bf16.msra.mxu0 %v735
        %994 = vmatpush.bf16.msra.mxu0 %v734
        %995 = vmatpush.bf16.msra.mxu0 %v733
        %996 = vmatpush.bf16.msra.mxu0 %v732
        %997 = vmatmul.bf16.gmra.mxu0 %v951
        %v998 = vpop.f32.mrf.mxu0
        %v999 = vadd.f32 0.0, %v998
        %v1000 = vpop.f32.mrf.mxu0
        %v1001 = vadd.f32 0.0, %v1000
        %1002 = vmatmul.bf16.gmra.mxu0 %v954
        %v1003 = vpop.f32.mrf.mxu0
        %v1004 = vadd.f32 0.0, %v1003
        %v1005 = vpop.f32.mrf.mxu0
        %v1006 = vadd.f32 0.0, %v1005
        %1007 = vmatmul.bf16.gmra.mxu0 %v957
        %v1008 = vpop.f32.mrf.mxu0
        %v1009 = vadd.f32 0.0, %v1008
        %v1010 = vpop.f32.mrf.mxu0
        %v1011 = vadd.f32 0.0, %v1010
        %1012 = vmatmul.bf16.gmra.mxu0 %v960
        %v1013 = vpop.f32.mrf.mxu0
        %v1014 = vadd.f32 0.0, %v1013
        %v1015 = vpop.f32.mrf.mxu0
        %v1016 = vadd.f32 0.0, %v1015
        %1017 = vmatmul.bf16.gmra.mxu0 %v963
        %v1018 = vpop.f32.mrf.mxu0
        %v1019 = vadd.f32 0.0, %v1018
        %v1020 = vpop.f32.mrf.mxu0
        %v1021 = vadd.f32 0.0, %v1020
        %1022 = vmatmul.bf16.gmra.mxu0 %v966
        %v1023 = vpop.f32.mrf.mxu0
        %v1024 = vadd.f32 0.0, %v1023
        %v1025 = vpop.f32.mrf.mxu0
        %v1026 = vadd.f32 0.0, %v1025
        %1027 = vmatmul.bf16.gmra.mxu0 %v969
        %v1028 = vpop.f32.mrf.mxu0
        %v1029 = vadd.f32 0.0, %v1028
        %v1030 = vpop.f32.mrf.mxu0
        %v1031 = vadd.f32 0.0, %v1030
        %1032 = vmatmul.bf16.gmra.mxu0 %v972
        %v1033 = vpop.f32.mrf.mxu0
        %v1034 = vadd.f32 0.0, %v1033
        %v1035 = vpop.f32.mrf.mxu0
        %v1036 = vadd.f32 0.0, %v1035
        %1037 = vmatmul.bf16.gmra.mxu0 %v975
        %v1038 = vpop.f32.mrf.mxu0
        %v1039 = vadd.f32 0.0, %v1038
        %v1040 = vpop.f32.mrf.mxu0
        %v1041 = vadd.f32 0.0, %v1040
        %1042 = vmatmul.bf16.gmra.mxu0 %v978
        %v1043 = vpop.f32.mrf.mxu0
        %v1044 = vadd.f32 0.0, %v1043
        %v1045 = vpop.f32.mrf.mxu0
        %v1046 = vadd.f32 0.0, %v1045
        %1047 = vmatmul.bf16.gmra.mxu0 %v981
        %v1048 = vpop.f32.mrf.mxu0
        %v1049 = vadd.f32 0.0, %v1048
        %v1050 = vpop.f32.mrf.mxu0
        %v1051 = vadd.f32 0.0, %v1050
        %1052 = vmatmul.bf16.gmra.mxu0 %v984
        %v1053 = vpop.f32.mrf.mxu0
        %v1054 = vadd.f32 0.0, %v1053
        %v1055 = vpop.f32.mrf.mxu0
        %v1056 = vadd.f32 0.0, %v1055
        %1057 = vmatmul.bf16.gmra.mxu0 %v987
        %v1058 = vpop.f32.mrf.mxu0
        %v1059 = vadd.f32 0.0, %v1058
        %v1060 = vpop.f32.mrf.mxu0
        %1061 = vdwg.mxu0
        %v1062 = vmax.f32 %v798, %v999
        %v1063 = vmax.f32 %v800, %v1001
        %v1064 = vmax.f32 %v803, %v1004
        %v1065 = vmax.f32 %v805, %v1006
        %v1066 = vmax.f32 %v808, %v1009
        %v1067 = vmax.f32 %v810, %v1011
        %v1068 = vmax.f32 %v813, %v1014
        %v1069 = vmax.f32 %v815, %v1016
        %v1070 = vmax.f32 %v818, %v1019
        %v1071 = vmax.f32 %v820, %v1021
        %v1072 = vmax.f32 %v823, %v1024
        %v1073 = vmax.f32 %v825, %v1026
        %v1074 = vmax.f32 %v828, %v1029
        %v1075 = vmax.f32 %v830, %v1031
        %v1076 = vmax.f32 %v833, %v1034
        %v1077 = vmax.f32 %v835, %v1036
        %v1078 = vmax.f32 %v838, %v1039
        %v1079 = vmax.f32 %v840, %v1041
        %v1080 = vmax.f32 %v843, %v1044
        %v1081 = vmax.f32 %v845, %v1046
        %v1082 = vmax.f32 %v848, %v1049
        %v1083 = vmax.f32 %v850, %v1051
        %v1084 = vmax.f32 %v853, %v1054
        %v1085 = vmax.f32 %v855, %v1056
        %v1086 = vmax.f32 %v858, %v1059
        %s1087 = scalar_lea.vmem %s585, 200 [#allocation2]
        %v1088 = vld [vmem:[%s1087] sm:$0xf]
        %v1089 = vld [vmem:[%s1087 + $0x4] sm:$0xf]
        %v1090 = vld [vmem:[%s1087 + $0x8] sm:$0xf]
        %v1091 = vld [vmem:[%s1087 + $0xc] sm:$0xf]
        %v1092 = vld [vmem:[%s1087 + $0x10] sm:$0xf]
        %v1093 = vld [vmem:[%s1087 + $0x14] sm:$0xf]
        %v1094 = vld [vmem:[%s1087 + $0x18] sm:$0xf]
        %v1095 = vld [vmem:[%s1087 + $0x1c] sm:$0xf]
        %v1096 = vld [vmem:[%s1087 + $0x20] sm:$0xf]
        %v1097 = vld [vmem:[%s1087 + $0x24] sm:$0xf]
        %v1098 = vld [vmem:[%s1087 + $0x28] sm:$0xf]
        %v1099 = vld [vmem:[%s1087 + $0x2c] sm:$0xf]
        %v1100 = vld [vmem:[%s1087 + $0x30] sm:$0xf]
        %v1101 = vld [vmem:[%s1087 + $0x34] sm:$0xf]
        %v1102 = vld [vmem:[%s1087 + $0x38] sm:$0xf]
        %v1103 = vld [vmem:[%s1087 + $0x3c] sm:$0xf]
        %v1104 = vld [vmem:[%s1087 + $0x40] sm:$0xf]
        %v1105 = vld [vmem:[%s1087 + $0x44] sm:$0xf]
        %v1106 = vld [vmem:[%s1087 + $0x48] sm:$0xf]
        %v1107 = vld [vmem:[%s1087 + $0x4c] sm:$0xf]
        %v1108 = vld [vmem:[%s1087 + $0x50] sm:$0xf]
        %v1109 = vld [vmem:[%s1087 + $0x54] sm:$0xf]
        %v1110 = vld [vmem:[%s1087 + $0x58] sm:$0xf]
        %v1111 = vld [vmem:[%s1087 + $0x5c] sm:$0xf]
        %v1112 = vld [vmem:[%s1087 + $0x60] sm:$0xf]
        %v1138 = vunpack.c.l.b16 %v1088
        %v1139 = vunpack.c.l.b16 %v1089
        %v1140 = vunpack.c.l.b16 %v1090
        %v1141 = vunpack.c.l.b16 %v1091
        %v1142 = vunpack.c.l.b16 %v1092
        %v1143 = vunpack.c.l.b16 %v1093
        %v1144 = vunpack.c.l.b16 %v1094
        %v1145 = vunpack.c.l.b16 %v1095
        %v1146 = vunpack.c.l.b16 %v1096
        %v1147 = vunpack.c.l.b16 %v1097
        %v1148 = vunpack.c.l.b16 %v1098
        %v1149 = vunpack.c.l.b16 %v1099
        %v1150 = vunpack.c.l.b16 %v1100
        %v1151 = vunpack.c.l.b16 %v1101
        %v1152 = vunpack.c.l.b16 %v1102
        %v1153 = vunpack.c.l.b16 %v1103
        %v1154 = vunpack.c.l.b16 %v1104
        %v1155 = vunpack.c.l.b16 %v1105
        %v1156 = vunpack.c.l.b16 %v1106
        %v1157 = vunpack.c.l.b16 %v1107
        %v1158 = vunpack.c.l.b16 %v1108
        %v1159 = vunpack.c.l.b16 %v1109
        %v1160 = vunpack.c.l.b16 %v1110
        %v1161 = vunpack.c.l.b16 %v1111
        %v1162 = vunpack.c.l.b16 %v1112
        %v1163 = vpack.c.b16 %v1139, %v1138
        %v1164 = vpack.c.b16 %v1141, %v1140
        %v1165 = vpack.c.b16 %v1143, %v1142
        %v1166 = vpack.c.b16 %v1145, %v1144
        %v1167 = vpack.c.b16 %v1147, %v1146
        %v1168 = vpack.c.b16 %v1149, %v1148
        %v1169 = vpack.c.b16 %v1151, %v1150
        %v1170 = vpack.c.b16 %v1153, %v1152
        %v1171 = vpack.c.b16 %v1155, %v1154
        %v1172 = vpack.c.b16 %v1157, %v1156
        %v1173 = vpack.c.b16 %v1159, %v1158
        %v1174 = vpack.c.b16 %v1161, %v1160
        %v1175 = vpack.c.b16 %v1162, %v1162
        %v1177 = vsel %vm741, %v1163, 0
        %v1180 = vsel %vm741, %v1164, 0
        %v1183 = vsel %vm741, %v1165, 0
        %v1186 = vsel %vm741, %v1166, 0
        %v1189 = vsel %vm741, %v1167, 0
        %v1192 = vsel %vm741, %v1168, 0
        %v1195 = vsel %vm741, %v1169, 0
        %v1198 = vsel %vm741, %v1170, 0
        %v1201 = vsel %vm741, %v1171, 0
        %v1204 = vsel %vm741, %v1172, 0
        %v1207 = vsel %vm741, %v1173, 0
        %v1210 = vsel %vm741, %v1174, 0
        %v1213 = vsel %vm741, %v1175, 0
        %1215 = vmatpush.bf16.msra.mxu0 0
        %1216 = vmatpush.bf16.msra.mxu0 0
        %1217 = vmatpush.bf16.msra.mxu0 0
        %1218 = vmatpush.bf16.msra.mxu0 %v786
        %1219 = vmatpush.bf16.msra.mxu0 %v735
        %1220 = vmatpush.bf16.msra.mxu0 %v734
        %1221 = vmatpush.bf16.msra.mxu0 %v733
        %1222 = vmatpush.bf16.msra.mxu0 %v732
        %1223 = vmatmul.bf16.gmra.mxu0 %v1177
        %v1224 = vpop.f32.mrf.mxu0
        %v1225 = vadd.f32 0.0, %v1224
        %v1226 = vpop.f32.mrf.mxu0
        %v1227 = vadd.f32 0.0, %v1226
        %1228 = vmatmul.bf16.gmra.mxu0 %v1180
        %v1229 = vpop.f32.mrf.mxu0
        %v1230 = vadd.f32 0.0, %v1229
        %v1231 = vpop.f32.mrf.mxu0
        %v1232 = vadd.f32 0.0, %v1231
        %1233 = vmatmul.bf16.gmra.mxu0 %v1183
        %v1234 = vpop.f32.mrf.mxu0
        %v1235 = vadd.f32 0.0, %v1234
        %v1236 = vpop.f32.mrf.mxu0
        %v1237 = vadd.f32 0.0, %v1236
        %1238 = vmatmul.bf16.gmra.mxu0 %v1186
        %v1239 = vpop.f32.mrf.mxu0
        %v1240 = vadd.f32 0.0, %v1239
        %v1241 = vpop.f32.mrf.mxu0
        %v1242 = vadd.f32 0.0, %v1241
        %1243 = vmatmul.bf16.gmra.mxu0 %v1189
        %v1244 = vpop.f32.mrf.mxu0
        %v1245 = vadd.f32 0.0, %v1244
        %v1246 = vpop.f32.mrf.mxu0
        %v1247 = vadd.f32 0.0, %v1246
        %1248 = vmatmul.bf16.gmra.mxu0 %v1192
        %v1249 = vpop.f32.mrf.mxu0
        %v1250 = vadd.f32 0.0, %v1249
        %v1251 = vpop.f32.mrf.mxu0
        %v1252 = vadd.f32 0.0, %v1251
        %1253 = vmatmul.bf16.gmra.mxu0 %v1195
        %v1254 = vpop.f32.mrf.mxu0
        %v1255 = vadd.f32 0.0, %v1254
        %v1256 = vpop.f32.mrf.mxu0
        %v1257 = vadd.f32 0.0, %v1256
        %1258 = vmatmul.bf16.gmra.mxu0 %v1198
        %v1259 = vpop.f32.mrf.mxu0
        %v1260 = vadd.f32 0.0, %v1259
        %v1261 = vpop.f32.mrf.mxu0
        %v1262 = vadd.f32 0.0, %v1261
        %1263 = vmatmul.bf16.gmra.mxu0 %v1201
        %v1264 = vpop.f32.mrf.mxu0
        %v1265 = vadd.f32 0.0, %v1264
        %v1266 = vpop.f32.mrf.mxu0
        %v1267 = vadd.f32 0.0, %v1266
        %1268 = vmatmul.bf16.gmra.mxu0 %v1204
        %v1269 = vpop.f32.mrf.mxu0
        %v1270 = vadd.f32 0.0, %v1269
        %v1271 = vpop.f32.mrf.mxu0
        %v1272 = vadd.f32 0.0, %v1271
        %1273 = vmatmul.bf16.gmra.mxu0 %v1207
        %v1274 = vpop.f32.mrf.mxu0
        %v1275 = vadd.f32 0.0, %v1274
        %v1276 = vpop.f32.mrf.mxu0
        %v1277 = vadd.f32 0.0, %v1276
        %1278 = vmatmul.bf16.gmra.mxu0 %v1210
        %v1279 = vpop.f32.mrf.mxu0
        %v1280 = vadd.f32 0.0, %v1279
        %v1281 = vpop.f32.mrf.mxu0
        %v1282 = vadd.f32 0.0, %v1281
        %1283 = vmatmul.bf16.gmra.mxu0 %v1213
        %v1284 = vpop.f32.mrf.mxu0
        %v1285 = vadd.f32 0.0, %v1284
        %v1286 = vpop.f32.mrf.mxu0
        %1287 = vdwg.mxu0
        %v1288 = vmax.f32 %v1062, %v1225
        %v1289 = vmax.f32 %v1063, %v1227
        %v1290 = vmax.f32 %v1064, %v1230
        %v1291 = vmax.f32 %v1065, %v1232
        %v1292 = vmax.f32 %v1066, %v1235
        %v1293 = vmax.f32 %v1067, %v1237
        %v1294 = vmax.f32 %v1068, %v1240
        %v1295 = vmax.f32 %v1069, %v1242
        %v1296 = vmax.f32 %v1070, %v1245
        %v1297 = vmax.f32 %v1071, %v1247
        %v1298 = vmax.f32 %v1072, %v1250
        %v1299 = vmax.f32 %v1073, %v1252
        %v1300 = vmax.f32 %v1074, %v1255
        %v1301 = vmax.f32 %v1075, %v1257
        %v1302 = vmax.f32 %v1076, %v1260
        %v1303 = vmax.f32 %v1077, %v1262
        %v1304 = vmax.f32 %v1078, %v1265
        %v1305 = vmax.f32 %v1079, %v1267
        %v1306 = vmax.f32 %v1080, %v1270
        %v1307 = vmax.f32 %v1081, %v1272
        %v1308 = vmax.f32 %v1082, %v1275
        %v1309 = vmax.f32 %v1083, %v1277
        %v1310 = vmax.f32 %v1084, %v1280
        %v1311 = vmax.f32 %v1085, %v1282
        %v1312 = vmax.f32 %v1086, %v1285
        %s1313 = scalar_lea.vmem %s585, 300 [#allocation2]
        %v1314 = vld [vmem:[%s1313] sm:$0xf]
        %v1315 = vld [vmem:[%s1313 + $0x4] sm:$0xf]
        %v1316 = vld [vmem:[%s1313 + $0x8] sm:$0xf]
        %v1317 = vld [vmem:[%s1313 + $0xc] sm:$0xf]
        %v1318 = vld [vmem:[%s1313 + $0x10] sm:$0xf]
        %v1319 = vld [vmem:[%s1313 + $0x14] sm:$0xf]
        %v1320 = vld [vmem:[%s1313 + $0x18] sm:$0xf]
        %v1321 = vld [vmem:[%s1313 + $0x1c] sm:$0xf]
        %v1322 = vld [vmem:[%s1313 + $0x20] sm:$0xf]
        %v1323 = vld [vmem:[%s1313 + $0x24] sm:$0xf]
        %v1324 = vld [vmem:[%s1313 + $0x28] sm:$0xf]
        %v1325 = vld [vmem:[%s1313 + $0x2c] sm:$0xf]
        %v1326 = vld [vmem:[%s1313 + $0x30] sm:$0xf]
        %v1327 = vld [vmem:[%s1313 + $0x34] sm:$0xf]
        %v1328 = vld [vmem:[%s1313 + $0x38] sm:$0xf]
        %v1329 = vld [vmem:[%s1313 + $0x3c] sm:$0xf]
        %v1330 = vld [vmem:[%s1313 + $0x40] sm:$0xf]
        %v1331 = vld [vmem:[%s1313 + $0x44] sm:$0xf]
        %v1332 = vld [vmem:[%s1313 + $0x48] sm:$0xf]
        %v1333 = vld [vmem:[%s1313 + $0x4c] sm:$0xf]
        %v1334 = vld [vmem:[%s1313 + $0x50] sm:$0xf]
        %v1335 = vld [vmem:[%s1313 + $0x54] sm:$0xf]
        %v1336 = vld [vmem:[%s1313 + $0x58] sm:$0xf]
        %v1337 = vld [vmem:[%s1313 + $0x5c] sm:$0xf]
        %v1338 = vld [vmem:[%s1313 + $0x60] sm:$0xf]
        %v1364 = vunpack.c.l.b16 %v1314
        %v1365 = vunpack.c.l.b16 %v1315
        %v1366 = vunpack.c.l.b16 %v1316
        %v1367 = vunpack.c.l.b16 %v1317
        %v1368 = vunpack.c.l.b16 %v1318
        %v1369 = vunpack.c.l.b16 %v1319
        %v1370 = vunpack.c.l.b16 %v1320
        %v1371 = vunpack.c.l.b16 %v1321
        %v1372 = vunpack.c.l.b16 %v1322
        %v1373 = vunpack.c.l.b16 %v1323
        %v1374 = vunpack.c.l.b16 %v1324
        %v1375 = vunpack.c.l.b16 %v1325
        %v1376 = vunpack.c.l.b16 %v1326
        %v1377 = vunpack.c.l.b16 %v1327
        %v1378 = vunpack.c.l.b16 %v1328
        %v1379 = vunpack.c.l.b16 %v1329
        %v1380 = vunpack.c.l.b16 %v1330
        %v1381 = vunpack.c.l.b16 %v1331
        %v1382 = vunpack.c.l.b16 %v1332
        %v1383 = vunpack.c.l.b16 %v1333
        %v1384 = vunpack.c.l.b16 %v1334
        %v1385 = vunpack.c.l.b16 %v1335
        %v1386 = vunpack.c.l.b16 %v1336
        %v1387 = vunpack.c.l.b16 %v1337
        %v1388 = vunpack.c.l.b16 %v1338
        %v1389 = vpack.c.b16 %v1365, %v1364
        %v1390 = vpack.c.b16 %v1367, %v1366
        %v1391 = vpack.c.b16 %v1369, %v1368
        %v1392 = vpack.c.b16 %v1371, %v1370
        %v1393 = vpack.c.b16 %v1373, %v1372
        %v1394 = vpack.c.b16 %v1375, %v1374
        %v1395 = vpack.c.b16 %v1377, %v1376
        %v1396 = vpack.c.b16 %v1379, %v1378
        %v1397 = vpack.c.b16 %v1381, %v1380
        %v1398 = vpack.c.b16 %v1383, %v1382
        %v1399 = vpack.c.b16 %v1385, %v1384
        %v1400 = vpack.c.b16 %v1387, %v1386
        %v1401 = vpack.c.b16 %v1388, %v1388
        %v1403 = vsel %vm741, %v1389, 0
        %v1406 = vsel %vm741, %v1390, 0
        %v1409 = vsel %vm741, %v1391, 0
        %v1412 = vsel %vm741, %v1392, 0
        %v1415 = vsel %vm741, %v1393, 0
        %v1418 = vsel %vm741, %v1394, 0
        %v1421 = vsel %vm741, %v1395, 0
        %v1424 = vsel %vm741, %v1396, 0
        %v1427 = vsel %vm741, %v1397, 0
        %v1430 = vsel %vm741, %v1398, 0
        %v1433 = vsel %vm741, %v1399, 0
        %v1436 = vsel %vm741, %v1400, 0
        %v1439 = vsel %vm741, %v1401, 0
        %1441 = vmatpush.bf16.msra.mxu0 0
        %1442 = vmatpush.bf16.msra.mxu0 0
        %1443 = vmatpush.bf16.msra.mxu0 0
        %1444 = vmatpush.bf16.msra.mxu0 %v786
        %1445 = vmatpush.bf16.msra.mxu0 %v735
        %1446 = vmatpush.bf16.msra.mxu0 %v734
        %1447 = vmatpush.bf16.msra.mxu0 %v733
        %1448 = vmatpush.bf16.msra.mxu0 %v732
        %1449 = vmatmul.bf16.gmra.mxu0 %v1403
        %v1450 = vpop.f32.mrf.mxu0
        %v1451 = vadd.f32 0.0, %v1450
        %v1452 = vpop.f32.mrf.mxu0
        %v1453 = vadd.f32 0.0, %v1452
        %1454 = vmatmul.bf16.gmra.mxu0 %v1406
        %v1455 = vpop.f32.mrf.mxu0
        %v1456 = vadd.f32 0.0, %v1455
        %v1457 = vpop.f32.mrf.mxu0
        %v1458 = vadd.f32 0.0, %v1457
        %1459 = vmatmul.bf16.gmra.mxu0 %v1409
        %v1460 = vpop.f32.mrf.mxu0
        %v1461 = vadd.f32 0.0, %v1460
        %v1462 = vpop.f32.mrf.mxu0
        %v1463 = vadd.f32 0.0, %v1462
        %1464 = vmatmul.bf16.gmra.mxu0 %v1412
        %v1465 = vpop.f32.mrf.mxu0
        %v1466 = vadd.f32 0.0, %v1465
        %v1467 = vpop.f32.mrf.mxu0
        %v1468 = vadd.f32 0.0, %v1467
        %1469 = vmatmul.bf16.gmra.mxu0 %v1415
        %v1470 = vpop.f32.mrf.mxu0
        %v1471 = vadd.f32 0.0, %v1470
        %v1472 = vpop.f32.mrf.mxu0
        %v1473 = vadd.f32 0.0, %v1472
        %1474 = vmatmul.bf16.gmra.mxu0 %v1418
        %v1475 = vpop.f32.mrf.mxu0
        %v1476 = vadd.f32 0.0, %v1475
        %v1477 = vpop.f32.mrf.mxu0
        %v1478 = vadd.f32 0.0, %v1477
        %1479 = vmatmul.bf16.gmra.mxu0 %v1421
        %v1480 = vpop.f32.mrf.mxu0
        %v1481 = vadd.f32 0.0, %v1480
        %v1482 = vpop.f32.mrf.mxu0
        %v1483 = vadd.f32 0.0, %v1482
        %1484 = vmatmul.bf16.gmra.mxu0 %v1424
        %v1485 = vpop.f32.mrf.mxu0
        %v1486 = vadd.f32 0.0, %v1485
        %v1487 = vpop.f32.mrf.mxu0
        %v1488 = vadd.f32 0.0, %v1487
        %1489 = vmatmul.bf16.gmra.mxu0 %v1427
        %v1490 = vpop.f32.mrf.mxu0
        %v1491 = vadd.f32 0.0, %v1490
        %v1492 = vpop.f32.mrf.mxu0
        %v1493 = vadd.f32 0.0, %v1492
        %1494 = vmatmul.bf16.gmra.mxu0 %v1430
        %v1495 = vpop.f32.mrf.mxu0
        %v1496 = vadd.f32 0.0, %v1495
        %v1497 = vpop.f32.mrf.mxu0
        %v1498 = vadd.f32 0.0, %v1497
        %1499 = vmatmul.bf16.gmra.mxu0 %v1433
        %v1500 = vpop.f32.mrf.mxu0
        %v1501 = vadd.f32 0.0, %v1500
        %v1502 = vpop.f32.mrf.mxu0
        %v1503 = vadd.f32 0.0, %v1502
        %1504 = vmatmul.bf16.gmra.mxu0 %v1436
        %v1505 = vpop.f32.mrf.mxu0
        %v1506 = vadd.f32 0.0, %v1505
        %v1507 = vpop.f32.mrf.mxu0
        %v1508 = vadd.f32 0.0, %v1507
        %1509 = vmatmul.bf16.gmra.mxu0 %v1439
        %v1510 = vpop.f32.mrf.mxu0
        %v1511 = vadd.f32 0.0, %v1510
        %v1512 = vpop.f32.mrf.mxu0
        %1513 = vdwg.mxu0
        %v1514 = vmax.f32 %v1288, %v1451
        %v1515 = vmax.f32 %v1289, %v1453
        %v1516 = vmax.f32 %v1290, %v1456
        %v1517 = vmax.f32 %v1291, %v1458
        %v1518 = vmax.f32 %v1292, %v1461
        %v1519 = vmax.f32 %v1293, %v1463
        %v1520 = vmax.f32 %v1294, %v1466
        %v1521 = vmax.f32 %v1295, %v1468
        %v1522 = vmax.f32 %v1296, %v1471
        %v1523 = vmax.f32 %v1297, %v1473
        %v1524 = vmax.f32 %v1298, %v1476
        %v1525 = vmax.f32 %v1299, %v1478
        %v1526 = vmax.f32 %v1300, %v1481
        %v1527 = vmax.f32 %v1301, %v1483
        %v1528 = vmax.f32 %v1302, %v1486
        %v1529 = vmax.f32 %v1303, %v1488
        %v1530 = vmax.f32 %v1304, %v1491
        %v1531 = vmax.f32 %v1305, %v1493
        %v1532 = vmax.f32 %v1306, %v1496
        %v1533 = vmax.f32 %v1307, %v1498
        %v1534 = vmax.f32 %v1308, %v1501
        %v1535 = vmax.f32 %v1309, %v1503
        %v1536 = vmax.f32 %v1310, %v1506
        %v1537 = vmax.f32 %v1311, %v1508
        %v1538 = vmax.f32 %v1312, %v1511
        %v1539 = vld [vmem:[%s2] sm:$0x1]
        %v1541 = vperm.slane %v1539, 0
        %v1543 = vadd.f32 %v1514, %v1541
        %v1544 = vadd.f32 %v1515, %v1541
        %v1545 = vadd.f32 %v1516, %v1541
        %v1546 = vadd.f32 %v1517, %v1541
        %v1547 = vadd.f32 %v1518, %v1541
        %v1548 = vadd.f32 %v1519, %v1541
        %v1549 = vadd.f32 %v1520, %v1541
        %v1550 = vadd.f32 %v1521, %v1541
        %v1551 = vadd.f32 %v1522, %v1541
        %v1552 = vadd.f32 %v1523, %v1541
        %v1553 = vadd.f32 %v1524, %v1541
        %v1554 = vadd.f32 %v1525, %v1541
        %v1555 = vadd.f32 %v1526, %v1541
        %v1556 = vadd.f32 %v1527, %v1541
        %v1557 = vadd.f32 %v1528, %v1541
        %v1558 = vadd.f32 %v1529, %v1541
        %v1559 = vadd.f32 %v1530, %v1541
        %v1560 = vadd.f32 %v1531, %v1541
        %v1561 = vadd.f32 %v1532, %v1541
        %v1562 = vadd.f32 %v1533, %v1541
        %v1563 = vadd.f32 %v1534, %v1541
        %v1564 = vadd.f32 %v1535, %v1541
        %v1565 = vadd.f32 %v1536, %v1541
        %v1566 = vadd.f32 %v1537, %v1541
        %v1567 = vadd.f32 %v1538, %v1541
        %v1568 = vmax.f32 %v1543, 0.0
        %v1569 = vmax.f32 %v1544, 0.0
        %v1570 = vmax.f32 %v1545, 0.0
        %v1571 = vmax.f32 %v1546, 0.0
        %v1572 = vmax.f32 %v1547, 0.0
        %v1573 = vmax.f32 %v1548, 0.0
        %v1574 = vmax.f32 %v1549, 0.0
        %v1575 = vmax.f32 %v1550, 0.0
        %v1576 = vmax.f32 %v1551, 0.0
        %v1577 = vmax.f32 %v1552, 0.0
        %v1578 = vmax.f32 %v1553, 0.0
        %v1579 = vmax.f32 %v1554, 0.0
        %v1580 = vmax.f32 %v1555, 0.0
        %v1581 = vmax.f32 %v1556, 0.0
        %v1582 = vmax.f32 %v1557, 0.0
        %v1583 = vmax.f32 %v1558, 0.0
        %v1584 = vmax.f32 %v1559, 0.0
        %v1585 = vmax.f32 %v1560, 0.0
        %v1586 = vmax.f32 %v1561, 0.0
        %v1587 = vmax.f32 %v1562, 0.0
        %v1588 = vmax.f32 %v1563, 0.0
        %v1589 = vmax.f32 %v1564, 0.0
        %v1590 = vmax.f32 %v1565, 0.0
        %v1591 = vmax.f32 %v1566, 0.0
        %v1592 = vmax.f32 %v1567, 0.0
        %v1593 = vpack.c.bf16 %v1568, %v1568
        %v1594 = vpack.c.bf16 %v1569, %v1569
        %v1595 = vpack.c.bf16 %v1570, %v1570
        %v1596 = vpack.c.bf16 %v1571, %v1571
        %v1597 = vpack.c.bf16 %v1572, %v1572
        %v1598 = vpack.c.bf16 %v1573, %v1573
        %v1599 = vpack.c.bf16 %v1574, %v1574
        %v1600 = vpack.c.bf16 %v1575, %v1575
        %v1601 = vpack.c.bf16 %v1576, %v1576
        %v1602 = vpack.c.bf16 %v1577, %v1577
        %v1603 = vpack.c.bf16 %v1578, %v1578
        %v1604 = vpack.c.bf16 %v1579, %v1579
        %v1605 = vpack.c.bf16 %v1580, %v1580
        %v1606 = vpack.c.bf16 %v1581, %v1581
        %v1607 = vpack.c.bf16 %v1582, %v1582
        %v1608 = vpack.c.bf16 %v1583, %v1583
        %v1609 = vpack.c.bf16 %v1584, %v1584
        %v1610 = vpack.c.bf16 %v1585, %v1585
        %v1611 = vpack.c.bf16 %v1586, %v1586
        %v1612 = vpack.c.bf16 %v1587, %v1587
        %v1613 = vpack.c.bf16 %v1588, %v1588
        %v1614 = vpack.c.bf16 %v1589, %v1589
        %v1615 = vpack.c.bf16 %v1590, %v1590
        %v1616 = vpack.c.bf16 %v1591, %v1591
        %v1617 = vpack.c.bf16 %v1592, %v1592
        %1618 = vst [vmem:[%s611] sm:$0xf] %v1593
        %1619 = vst [vmem:[%s611 + $0x4] sm:$0xf] %v1594
        %1620 = vst [vmem:[%s611 + $0x8] sm:$0xf] %v1595
        %1621 = vst [vmem:[%s611 + $0xc] sm:$0xf] %v1596
        %1622 = vst [vmem:[%s611 + $0x10] sm:$0xf] %v1597
        %1623 = vst [vmem:[%s611 + $0x14] sm:$0xf] %v1598
        %1624 = vst [vmem:[%s611 + $0x18] sm:$0xf] %v1599
        %1625 = vst [vmem:[%s611 + $0x1c] sm:$0xf] %v1600
        %1626 = vst [vmem:[%s611 + $0x20] sm:$0xf] %v1601
        %1627 = vst [vmem:[%s611 + $0x24] sm:$0xf] %v1602
        %1628 = vst [vmem:[%s611 + $0x28] sm:$0xf] %v1603
        %1629 = vst [vmem:[%s611 + $0x2c] sm:$0xf] %v1604
        %1630 = vst [vmem:[%s611 + $0x30] sm:$0xf] %v1605
        %1631 = vst [vmem:[%s611 + $0x34] sm:$0xf] %v1606
        %1632 = vst [vmem:[%s611 + $0x38] sm:$0xf] %v1607
        %1633 = vst [vmem:[%s611 + $0x3c] sm:$0xf] %v1608
        %1634 = vst [vmem:[%s611 + $0x40] sm:$0xf] %v1609
        %1635 = vst [vmem:[%s611 + $0x44] sm:$0xf] %v1610
        %1636 = vst [vmem:[%s611 + $0x48] sm:$0xf] %v1611
        %1637 = vst [vmem:[%s611 + $0x4c] sm:$0xf] %v1612
        %1638 = vst [vmem:[%s611 + $0x50] sm:$0xf] %v1613
        %1639 = vst [vmem:[%s611 + $0x54] sm:$0xf] %v1614
        %1640 = vst [vmem:[%s611 + $0x58] sm:$0xf] %v1615
        %1641 = vst [vmem:[%s611 + $0x5c] sm:$0xf] %v1616
        %1642 = vst [vmem:[%s611 + $0x60] sm:$0xf] %v1617
        %s1643 = smul.u32 25, %s14
        %p1644 = scmp.lt.s32.totalorder %s1643, 49
        %s1645 = scalar_select %p1644, %s1643, 49
        %s1646 = smul.addr %s1645, 4
        %s1647 = scalar_lea.vmem %s3, %s1646
        // Predicated region
        $region74: #{lenet_forward.3} parent=68 // pred_check
          %p1648 = pneg %p100
        $region75: #{lenet_forward.3} parent=68 // pred_check_branch
          %1650 = sbr.rel (%p1648) target = $region77
        $region76: #{lenet_forward.3} parent=68 // pred_region
          %s1651 = smul.u32 25, %s14
        $region77: #{lenet_forward.3} parent=68 // pred_fallthru
          _
      $region69: #{lenet_forward.3} parent=5 // pred_fallthru
        _
      %p1652 = scmp.le.s32.totalorder 2, %s9
      // Predicated region
      $region78: #{lenet_forward.3} parent=5 // pred_check
        %p1653 = pneg %p1652
      $region79: #{lenet_forward.3} parent=5 // pred_check_branch
        %1655 = sbr.rel (%p1653) target = $region81
      $region80: #{lenet_forward.3} parent=5 // pred_region
        %s1656 = ssub.s32 %s9, 2
        // Predicated region
        $region82: #{lenet_forward.3} parent=80 // pred_check
          %p1657 = pneg %p106
        $region83: #{lenet_forward.3} parent=80 // pred_check_branch
          %1659 = sbr.rel (%p1657) target = $region85
        $region84: #{lenet_forward.3} parent=80 // pred_region
          %s1660 = smul.u32 25, %s15
          %p1661 = scmp.lt.s32.totalorder %s1660, 49
          %s1662 = scalar_select %p1661, %s1660, 49
          %s1663 = smul.addr %s1662, 4
          %s1664 = scalar_lea.vmem %s3, %s1663
        $region85: #{lenet_forward.3} parent=80 // pred_fallthru
          _
      $region81: #{lenet_forward.3} parent=5 // pred_fallthru
        _
    $region6: #{lenet_forward.3} parent=1 // loop_footer
      %s13 = sadd.s32 1, %s9
    $region7: #{lenet_forward.3} parent=1 // loop_footer_branch
      %8 = sbr.rel target = $region3
    $region8: #{lenet_forward.3} parent=1 // loop_exit
      _

// kernel: lenet_forward.4
$region0: #{lenet_forward.4}
  #allocation0 [shape = 'u32[]', space=smem, size = 0x4, offset = 0x4, fixed_abs, tag = 'smem constant byte address 0x4 - core index']
  #allocation1 [shape = 'u32[72,128]{1,0:T(1,128)}', space=vmem, size = 0x9000, scoped, tag = 'internal scratch']
  %s0 = inlined_call_operand.vmem [shape: bf16[4,64,150], index: 0, kind: input, shape index: {}]
  %s1 = inlined_call_operand.vmem [shape: bf16[150,128], index: 1, kind: input, shape index: {}]
  %s2 = inlined_call_operand.vmem [shape: f32[1,128], index: 2, kind: input, shape index: {}]
  %s3 = inlined_call_operand.vmem [shape: bf16[64,128], index: 3, kind: output, shape index: {}]
  %s4 = sld [smem:[#allocation0]]
  $region83: #{lenet_forward.4} parent=0
    _
  %s6 = ssub.s32 1, %s4
  %s7 = scalar_select 0, %s6, %s4
  $region1: #{lenet_forward.4} parent=0
    #allocation2 [shape = 'u8[131072]{0}', space=vmem, size = 0x20000, scoped, tag = 'input window, operand 0']
    loop: start=0, step=1, limit=4
    $region2: #{lenet_forward.4} parent=1 // loop_pre_header
      _
    $region3: #{lenet_forward.4} parent=1 // loop_header
      %s9 = sphi 0, %s13
      %p10 = scmp.ge.s32.totalorder %s9, 4
      %s19 = sphi 0, %s21
      %s22 = sphi 0, %s19
      %s23 = sphi 0, %s22
      %s39 = sphi 0, %s23
      %s43 = sphi 0, %s43
      %s45 = sphi 0, %s43
      %s46 = sphi 0, %s45
      %s60 = sphi 0, %s46
      %s64 = sphi 0, %s64
      %s66 = sphi 0, %s64
      %s67 = sphi 0, %s66
      %s81 = sphi 0, %s67
      %s87 = sphi 0, %s89
      %s90 = sphi 0, %s87
      %s91 = sphi 0, %s90
      %s107 = sphi 0, %s91
    $region4: #{lenet_forward.4} parent=1 // loop_header_branch
      %12 = sbr.rel (%p10) target = $region8
    $region5: #{lenet_forward.4} parent=1 // loop_body
      %s14 = ssub.s32 %s9, 1
      %s15 = ssub.s32 %s9, 2
      %s16 = sadd.s32 %s9, 1
      %s17 = ssub.s32 %s9, %s16
      %p18 = scmp.eq.s32.totalorder %s17, 0
      %s20 = sadd.s32 %s19, 1
      %s21 = scalar_select %p18, %s19, %s20
      %p24 = pneg %p18
      %p25 = scmp.eq.s32.totalorder %s9, 1
      %p26 = por %p24, %p25
      %p27 = scmp.ne.s32.totalorder %s19, %s22
      %p28 = scmp.eq.s32.totalorder %s9, 0
      %p29 = por %p27, %p28
      %p30 = scmp.ne.s32.totalorder %s19, %s22
      %p31 = scmp.eq.s32.totalorder %s14, 1
      %p32 = por %p30, %p31
      %p33 = scmp.ne.s32.totalorder %s22, %s23
      %p34 = scmp.eq.s32.totalorder %s14, 0
      %p35 = por %p33, %p34
      %p36 = scmp.ne.s32.totalorder %s22, %s23
      %p37 = scmp.eq.s32.totalorder %s15, 1
      %p38 = por %p36, %p37
      %p40 = scmp.ne.s32.totalorder %s23, %s39
      %p41 = scmp.eq.s32.totalorder %s15, 0
      %p42 = por %p40, %p41
      %s44 = sadd.s32 %s43, 1
      %p47 = scmp.eq.s32.totalorder %s9, 1
      %p48 = scmp.ne.s32.totalorder %s43, %s45
      %p49 = scmp.eq.s32.totalorder %s9, 0
      %p50 = por %p48, %p49
      %p51 = scmp.ne.s32.totalorder %s43, %s45
      %p52 = scmp.eq.s32.totalorder %s14, 1
      %p53 = por %p51, %p52
      %p54 = scmp.ne.s32.totalorder %s45, %s46
      %p55 = scmp.eq.s32.totalorder %s14, 0
      %p56 = por %p54, %p55
      %p57 = scmp.ne.s32.totalorder %s45, %s46
      %p58 = scmp.eq.s32.totalorder %s15, 1
      %p59 = por %p57, %p58
      %p61 = scmp.ne.s32.totalorder %s46, %s60
      %p62 = scmp.eq.s32.totalorder %s15, 0
      %p63 = por %p61, %p62
      %s65 = sadd.s32 %s64, 1
      %p68 = scmp.eq.s32.totalorder %s9, 1
      %p69 = scmp.ne.s32.totalorder %s64, %s66
      %p70 = scmp.eq.s32.totalorder %s9, 0
      %p71 = por %p69, %p70
      %p72 = scmp.ne.s32.totalorder %s64, %s66
      %p73 = scmp.eq.s32.totalorder %s14, 1
      %p74 = por %p72, %p73
      %p75 = scmp.ne.s32.totalorder %s66, %s67
      %p76 = scmp.eq.s32.totalorder %s14, 0
      %p77 = por %p75, %p76
      %p78 = scmp.ne.s32.totalorder %s66, %s67
      %p79 = scmp.eq.s32.totalorder %s15, 1
      %p80 = por %p78, %p79
      %p82 = scmp.ne.s32.totalorder %s67, %s81
      %p83 = scmp.eq.s32.totalorder %s15, 0
      %p84 = por %p82, %p83
      %s85 = ssub.s32 %s9, %s16
      %p86 = scmp.eq.s32.totalorder %s85, 0
      %s88 = sadd.s32 %s87, 1
      %s89 = scalar_select %p86, %s87, %s88
      %p92 = pneg %p86
      %p93 = scmp.eq.s32.totalorder %s9, 1
      %p94 = por %p92, %p93
      %p95 = scmp.ne.s32.totalorder %s87, %s90
      %p96 = scmp.eq.s32.totalorder %s9, 0
      %p97 = por %p95, %p96
      %p98 = scmp.ne.s32.totalorder %s87, %s90
      %p99 = scmp.eq.s32.totalorder %s14, 1
      %p100 = por %p98, %p99
      %p101 = scmp.ne.s32.totalorder %s90, %s91
      %p102 = scmp.eq.s32.totalorder %s14, 0
      %p103 = por %p101, %p102
      %p104 = scmp.ne.s32.totalorder %s90, %s91
      %p105 = scmp.eq.s32.totalorder %s15, 1
      %p106 = por %p104, %p105
      %p108 = scmp.ne.s32.totalorder %s91, %s107
      %p109 = scmp.eq.s32.totalorder %s15, 0
      %p110 = por %p108, %p109
      %p111 = scmp.le.s32.totalorder 1, %s9
      %p112 = scmp.lt.s32.totalorder %s9, 3
      %p113 = pnand %p111, %p112
      %p114 = pneg %p113
      // Predicated region
      $region9: #{lenet_forward.4} parent=5 // pred_check
        _
      $region10: #{lenet_forward.4} parent=5 // pred_check_branch
        %116 = sbr.rel (%p113) target = $region12
      $region11: #{lenet_forward.4} parent=5 // pred_region
        %s117 = ssub.s32 %s9, 1
        // Predicated region
        $region13: #{lenet_forward.4} parent=11 // pred_check
          %p118 = pneg %p56
        $region14: #{lenet_forward.4} parent=11 // pred_check_branch
          %120 = sbr.rel (%p118) target = $region16
        $region15: #{lenet_forward.4} parent=11 // pred_region
          _
        $region16: #{lenet_forward.4} parent=11 // pred_fallthru
          _
        // Predicated region
        $region17: #{lenet_forward.4} parent=11 // pred_check
          %p121 = pneg %p77
        $region18: #{lenet_forward.4} parent=11 // pred_check_branch
          %123 = sbr.rel (%p121) target = $region20
        $region19: #{lenet_forward.4} parent=11 // pred_region
          _
        $region20: #{lenet_forward.4} parent=11 // pred_fallthru
          _
      $region12: #{lenet_forward.4} parent=5 // pred_fallthru
        _
      %p124 = scmp.lt.s32.totalorder %s9, 2
      // Predicated region
      $region21: #{lenet_forward.4} parent=5 // pred_check
        %p125 = pneg %p124
      $region22: #{lenet_forward.4} parent=5 // pred_check_branch
        %127 = sbr.rel (%p125) target = $region24
      $region23: #{lenet_forward.4} parent=5 // pred_region
        // Predicated region
        $region25: #{lenet_forward.4} parent=23 // pred_check
          %p128 = pneg %p29
        $region26: #{lenet_forward.4} parent=23 // pred_check_branch
          %130 = sbr.rel (%p128) target = $region28
        $region27: #{lenet_forward.4} parent=23 // pred_region
          %s131 = sand.u32 %s19, 1
          %s132 = sand.u32 %s19, 1
          %s133 = smul.addr %s132, 128
          %s134 = scalar_lea.vmem [#allocation2], %s133
          %s135 = smul.u32 4, %s9
          %s136 = smul.addr %s135, 2
          %s137 = smul.addr %s136, 4
          %s138 = scalar_lea.vmem %s0, %s137
          // Predicated region
          $region29: #{lenet_forward.4} parent=27 // pred_check
            _
          $region30: #{lenet_forward.4} parent=27 // pred_check_branch
            %140 = sbr.rel (0) target = $region32
          $region31: #{lenet_forward.4} parent=27 // pred_region
            // Predicated region
            $region33: #{lenet_forward.4} parent=31 // pred_check
              _
            $region34: #{lenet_forward.4} parent=31 // pred_check_branch
              %142 = sbr.rel (0) target = $region36
            $region35: #{lenet_forward.4} parent=31 // pred_region
              // Predicated region
              $region48: #{lenet_forward.4} parent=35 // pred_check
                _
              $region49: #{lenet_forward.4} parent=35 // pred_check_branch
                %188 = sbr.rel (0) target = $region51
              $region50: #{lenet_forward.4} parent=35 // pred_region
                loop: start=0, step=1, limit=1
                $region52: #{lenet_forward.4} parent=50 // loop_pre_header
                  _
                $region53: #{lenet_forward.4} parent=50 // loop_header
                  %s190 = sphi 0, %s194
                  %p191 = scmp.ge.s32.totalorder %s190, 1
                  %s195 = sphi %s138, %s138
                  %s196 = sphi %s134, %s134
                $region54: #{lenet_forward.4} parent=50 // loop_header_branch
                  %193 = sbr.rel (%p191) target = $region58
                $region55: #{lenet_forward.4} parent=50 // loop_body
                  %v197 = vld [vmem:[%s195] sm:$0xff]
                  %198 = vst [vmem:[%s196] sm:$0xff] %v197
                  %v199 = vld [vmem:[%s195 + $0x8] sm:$0xff]
                  %200 = vst [vmem:[%s196 + $0x8] sm:$0xff] %v199
                  %v201 = vld [vmem:[%s195 + $0x10] sm:$0xff]
                  %202 = vst [vmem:[%s196 + $0x10] sm:$0xff] %v201
                  %v203 = vld [vmem:[%s195 + $0x18] sm:$0xff]
                  %204 = vst [vmem:[%s196 + $0x18] sm:$0xff] %v203
                  %v205 = vld [vmem:[%s195 + $0x40] sm:$0xff]
                  %206 = vst [vmem:[%s196 + $0x20] sm:$0xff] %v205
                  %v207 = vld [vmem:[%s195 + $0x48] sm:$0xff]
                  %208 = vst [vmem:[%s196 + $0x28] sm:$0xff] %v207
                  %v209 = vld [vmem:[%s195 + $0x50] sm:$0xff]
                  %210 = vst [vmem:[%s196 + $0x30] sm:$0xff] %v209
                  %v211 = vld [vmem:[%s195 + $0x58] sm:$0xff]
                  %212 = vst [vmem:[%s196 + $0x38] sm:$0xff] %v211
                  %v213 = vld [vmem:[%s195 + $0x80] sm:$0xff]
                  %214 = vst [vmem:[%s196 + $0x40] sm:$0xff] %v213
                  %v215 = vld [vmem:[%s195 + $0x88] sm:$0xff]
                  %216 = vst [vmem:[%s196 + $0x48] sm:$0xff] %v215
                  %v217 = vld [vmem:[%s195 + $0x90] sm:$0xff]
                  %218 = vst [vmem:[%s196 + $0x50] sm:$0xff] %v217
                  %v219 = vld [vmem:[%s195 + $0x98] sm:$0xff]
                  %220 = vst [vmem:[%s196 + $0x58] sm:$0xff] %v219
                  %v221 = vld [vmem:[%s195 + $0xc0] sm:$0xff]
                  %222 = vst [vmem:[%s196 + $0x60] sm:$0xff] %v221
                  %v223 = vld [vmem:[%s195 + $0xc8] sm:$0xff]
                  %224 = vst [vmem:[%s196 + $0x68] sm:$0xff] %v223
                  %v225 = vld [vmem:[%s195 + $0xd0] sm:$0xff]
                  %226 = vst [vmem:[%s196 + $0x70] sm:$0xff] %v225
                  %v227 = vld [vmem:[%s195 + $0xd8] sm:$0xff]
                  %228 = vst [vmem:[%s196 + $0x78] sm:$0xff] %v227
                $region56: #{lenet_forward.4} parent=50 // loop_footer
                  %s194 = sadd.s32 1, %s190
                $region57: #{lenet_forward.4} parent=50 // loop_footer_branch
                  %189 = sbr.rel target = $region53
                $region58: #{lenet_forward.4} parent=50 // loop_exit
                  _
              $region51: #{lenet_forward.4} parent=35 // pred_fallthru
                _
              // Predicated region
              $region59: #{lenet_forward.4} parent=35 // pred_check
                _
              $region60: #{lenet_forward.4} parent=35 // pred_check_branch
                %230 = sbr.rel target = $region62
              $region61: #{lenet_forward.4} parent=35 // pred_region
                _
              $region62: #{lenet_forward.4} parent=35 // pred_fallthru
                _
            $region36: #{lenet_forward.4} parent=31 // pred_fallthru
              _
            // Predicated region
            $region37: #{lenet_forward.4} parent=31 // pred_check
              _
            $region38: #{lenet_forward.4} parent=31 // pred_check_branch
              %144 = sbr.rel target = $region40
            $region39: #{lenet_forward.4} parent=31 // pred_region
              %s146 = ssub.s32 256, 1
              loop: start=0, step=1, limit=1
              $region41: #{lenet_forward.4} parent=39 // loop_pre_header
                _
              $region42: #{lenet_forward.4} parent=39 // loop_header
                %s148 = sphi 0, %s152
                %p149 = scmp.ge.s32.totalorder %s148, 1
                %s153 = sphi %s138, %s138
                %s154 = sphi %s134, %s134
              $region43: #{lenet_forward.4} parent=39 // loop_header_branch
                %151 = sbr.rel (%p149) target = $region47
              $region44: #{lenet_forward.4} parent=39 // loop_body
                %v155 = vld [vmem:[%s153] sm:%s146]
                %156 = vst [vmem:[%s154] sm:%s146] %v155
                %v157 = vld [vmem:[%s153 + $0x8] sm:%s146]
                %158 = vst [vmem:[%s154 + $0x8] sm:%s146] %v157
                %v159 = vld [vmem:[%s153 + $0x10] sm:%s146]
                %160 = vst [vmem:[%s154 + $0x10] sm:%s146] %v159
                %v161 = vld [vmem:[%s153 + $0x18] sm:%s146]
                %162 = vst [vmem:[%s154 + $0x18] sm:%s146] %v161
                %v163 = vld [vmem:[%s153 + $0x40] sm:%s146]
                %164 = vst [vmem:[%s154 + $0x20] sm:%s146] %v163
                %v165 = vld [vmem:[%s153 + $0x48] sm:%s146]
                %166 = vst [vmem:[%s154 + $0x28] sm:%s146] %v165
                %v167 = vld [vmem:[%s153 + $0x50] sm:%s146]
                %168 = vst [vmem:[%s154 + $0x30] sm:%s146] %v167
                %v169 = vld [vmem:[%s153 + $0x58] sm:%s146]
                %170 = vst [vmem:[%s154 + $0x38] sm:%s146] %v169
                %v171 = vld [vmem:[%s153 + $0x80] sm:%s146]
                %172 = vst [vmem:[%s154 + $0x40] sm:%s146] %v171
                %v173 = vld [vmem:[%s153 + $0x88] sm:%s146]
                %174 = vst [vmem:[%s154 + $0x48] sm:%s146] %v173
                %v175 = vld [vmem:[%s153 + $0x90] sm:%s146]
                %176 = vst [vmem:[%s154 + $0x50] sm:%s146] %v175
                %v177 = vld [vmem:[%s153 + $0x98] sm:%s146]
                %178 = vst [vmem:[%s154 + $0x58] sm:%s146] %v177
                %v179 = vld [vmem:[%s153 + $0xc0] sm:%s146]
                %180 = vst [vmem:[%s154 + $0x60] sm:%s146] %v179
                %v181 = vld [vmem:[%s153 + $0xc8] sm:%s146]
                %182 = vst [vmem:[%s154 + $0x68] sm:%s146] %v181
                %v183 = vld [vmem:[%s153 + $0xd0] sm:%s146]
                %184 = vst [vmem:[%s154 + $0x70] sm:%s146] %v183
                %v185 = vld [vmem:[%s153 + $0xd8] sm:%s146]
                %186 = vst [vmem:[%s154 + $0x78] sm:%s146] %v185
              $region45: #{lenet_forward.4} parent=39 // loop_footer
                %s152 = sadd.s32 1, %s148
              $region46: #{lenet_forward.4} parent=39 // loop_footer_branch
                %147 = sbr.rel target = $region42
              $region47: #{lenet_forward.4} parent=39 // loop_exit
                _
            $region40: #{lenet_forward.4} parent=31 // pred_fallthru
              _
          $region32: #{lenet_forward.4} parent=27 // pred_fallthru
            _
          %231 = vnop
        $region28: #{lenet_forward.4} parent=23 // pred_fallthru
          _
      $region24: #{lenet_forward.4} parent=5 // pred_fallthru
        _
      %p232 = scmp.le.s32.totalorder 1, %s9
      %p233 = scmp.lt.s32.totalorder %s9, 3
      %p234 = pnand %p232, %p233
      %p235 = pneg %p234
      // Predicated region
      $region63: #{lenet_forward.4} parent=5 // pred_check
        _
      $region64: #{lenet_forward.4} parent=5 // pred_check_branch
        %237 = sbr.rel (%p234) target = $region66
      $region65: #{lenet_forward.4} parent=5 // pred_region
        %s238 = ssub.s32 %s9, 1
        %s239 = sand.u32 %s22, 1
        %s240 = sand.u32 %s22, 1
        %s241 = smul.addr %s240, 128
        %s242 = scalar_lea.vmem [#allocation2], %s241
        // Predicated region
        $region67: #{lenet_forward.4} parent=65 // pred_check
          %p243 = pneg %p35
        $region68: #{lenet_forward.4} parent=65 // pred_check_branch
          %245 = sbr.rel (%p243) target = $region70
        $region69: #{lenet_forward.4} parent=65 // pred_region
          _
        $region70: #{lenet_forward.4} parent=65 // pred_fallthru
          _
        %s246 = sand.u32 %s22, 1
        %s247 = sand.u32 %s22, 1
        %s248 = smul.addr %s247, 128
        %s249 = scalar_lea.vmem [#allocation2], %s248
        %p250 = pneg %p35
        %p251 = pneg %p32
        %p252 = pneg %p56
        %p253 = pneg %p53
        %p254 = pneg %p77
        %p255 = pneg %p74
        %p256 = pneg %p103
        %p257 = pneg %p100
        %s258 = smul.u32 4, %s14
        %p259 = scmp.lt.s32.totalorder %s258, 7
        %s260 = scalar_select %p259, %s258, 7
        %s261 = smul.addr %s260, 4
        %s262 = scalar_lea.vmem %s3, %s261
        %s263 = smul.u32 4, %s14
        %s264 = smul.u32 4, %s14
        %p265 = scmp.lt.s32.totalorder %s264, 7
        %s266 = scalar_select %p265, %s264, 7
        %s267 = smul.addr %s266, 4
        %s268 = scalar_lea.vmem %s3, %s267
        %s269 = smul.u32 4, %s14
        %v271 = vld [vmem:[%s1] sm:$0xf]
        %v272 = vld [vmem:[%s1 + $0x4] sm:$0xf]
        %v273 = vld [vmem:[%s1 + $0x8] sm:$0xf]
        %v274 = vld [vmem:[%s1 + $0xc] sm:$0xf]
        %v275 = vld [vmem:[%s1 + $0x10] sm:$0xf]
        %v276 = vld [vmem:[%s1 + $0x14] sm:$0xf]
        %v277 = vld [vmem:[%s1 + $0x18] sm:$0xf]
        %v278 = vld [vmem:[%s1 + $0x1c] sm:$0xf]
        %v279 = vld [vmem:[%s1 + $0x20] sm:$0xf]
        %v280 = vld [vmem:[%s1 + $0x24] sm:$0xf]
        %v281 = vld [vmem:[%s1 + $0x28] sm:$0xf]
        %v282 = vld [vmem:[%s1 + $0x2c] sm:$0xf]
        %v283 = vld [vmem:[%s1 + $0x30] sm:$0xf]
        %v284 = vld [vmem:[%s1 + $0x34] sm:$0xf]
        %v285 = vld [vmem:[%s1 + $0x38] sm:$0xf]
        %v286 = vld [vmem:[%s1 + $0x3c] sm:$0xf]
        %v287 = vld [vmem:[%s1 + $0x40] sm:$0xf]
        %v288 = vld [vmem:[%s1 + $0x44] sm:$0xf]
        %v289 = vld [vmem:[%s1 + $0x48] sm:$0x7]
        %v290 = vld [vmem:[%s242] sm:$0xff]
        %v291 = vld [vmem:[%s242 + $0x8] sm:$0xff]
        %v292 = vld [vmem:[%s242 + $0x10] sm:$0xff]
        %v293 = vld [vmem:[%s242 + $0x18] sm:$0xff]
        %v298 = vunpack.c.l.b16 %v290
        %v299 = vunpack.c.h.b16 %v290
        %v300 = vunpack.c.l.b16 %v291
        %v301 = vunpack.c.h.b16 %v291
        %v302 = vunpack.c.l.b16 %v292
        %v303 = vunpack.c.h.b16 %v292
        %v304 = vunpack.c.l.b16 %v293
        %v305 = vunpack.c.h.b16 %v293
        %v306 = vpack.c.b16 %v300, %v298
        %v307 = vpack.c.b16 %v301, %v299
        %v308 = vpack.c.b16 %v304, %v302
        %v309 = vpack.c.b16 %v305, %v303
        %v331 = vunpack.c.l.b16 %v271
        %v332 = vunpack.c.l.b16 %v272
        %v333 = vunpack.c.l.b16 %v273
        %v334 = vunpack.c.l.b16 %v274
        %v335 = vunpack.c.l.b16 %v275
        %v336 = vunpack.c.l.b16 %v276
        %v337 = vunpack.c.l.b16 %v277
        %v338 = vunpack.c.l.b16 %v278
        %v339 = vunpack.c.l.b16 %v279
        %v340 = vunpack.c.l.b16 %v280
        %v341 = vunpack.c.l.b16 %v281
        %v342 = vunpack.c.l.b16 %v282
        %v343 = vunpack.c.l.b16 %v283
        %v344 = vunpack.c.l.b16 %v284
        %v345 = vunpack.c.l.b16 %v285
        %v346 = vunpack.c.l.b16 %v286
        %v347 = vunpack.c.l.b16 %v287
        %v348 = vunpack.c.l.b16 %v288
        %v349 = vunpack.c.l.b16 %v289
        %v350 = vpack.c.b16 %v332, %v331
        %v351 = vpack.c.b16 %v334, %v333
        %v352 = vpack.c.b16 %v336, %v335
        %v353 = vpack.c.b16 %v338, %v337
        %v354 = vpack.c.b16 %v340, %v339
        %v355 = vpack.c.b16 %v342, %v341
        %v356 = vpack.c.b16 %v344, %v343
        %v357 = vpack.c.b16 %v346, %v345
        %v358 = vpack.c.b16 %v348, %v347
        %v359 = vpack.c.b16 %v349, %v349
        %vm369 = vcmask 179200
        %v371 = vsel %vm369, %v307, 0
        %v374 = vsel %vm369, %v309, 0
        %vm376 = vcmask 1042432
        %v378 = vsel %vm376, %v359, 0
        %380 = vmatpush.bf16.msra.mxu0 %v357
        %381 = vmatpush.bf16.msra.mxu0 %v356
        %382 = vmatpush.bf16.msra.mxu0 %v355
        %383 = vmatpush.bf16.msra.mxu0 %v354
        %384 = vmatpush.bf16.msra.mxu0 %v353
        %385 = vmatpush.bf16.msra.mxu0 %v352
        %386 = vmatpush.bf16.msra.mxu0 %v351
        %387 = vmatpush.bf16.msra.mxu0 %v350
        %388 = vmatmul.bf16.gmra.mxu0 %v306
        %v389 = vpop.f32.mrf.mxu0
        %v390 = vadd.f32 0.0, %v389
        %v391 = vpop.f32.mrf.mxu0
        %v392 = vadd.f32 0.0, %v391
        %393 = vmatmul.bf16.gmra.mxu0 %v308
        %v394 = vpop.f32.mrf.mxu0
        %v395 = vadd.f32 0.0, %v394
        %v396 = vpop.f32.mrf.mxu0
        %v397 = vadd.f32 0.0, %v396
        %398 = vdwg.mxu0
        %399 = vmatpush.bf16.msra.mxu0 0
        %400 = vmatpush.bf16.msra.mxu0 0
        %401 = vmatpush.bf16.msra.mxu0 0
        %402 = vmatpush.bf16.msra.mxu0 0
        %403 = vmatpush.bf16.msra.mxu0 0
        %404 = vmatpush.bf16.msra.mxu0 0
        %405 = vmatpush.bf16.msra.mxu0 %v378
        %406 = vmatpush.bf16.msra.mxu0 %v358
        %407 = vmatmul.bf16.gmra.mxu0 %v371
        %v408 = vpop.f32.mrf.mxu0
        %v409 = vadd.f32 %v390, %v408
        %v410 = vpop.f32.mrf.mxu0
        %v411 = vadd.f32 %v392, %v410
        %412 = vmatmul.bf16.gmra.mxu0 %v374
        %v413 = vpop.f32.mrf.mxu0
        %v414 = vadd.f32 %v395, %v413
        %v415 = vpop.f32.mrf.mxu0
        %v416 = vadd.f32 %v397, %v415
        %417 = vdwg.mxu0
        %s418 = scalar_lea.vmem %s242, 32 [#allocation2]
        %v419 = vld [vmem:[%s418] sm:$0xff]
        %v420 = vld [vmem:[%s418 + $0x8] sm:$0xff]
        %v421 = vld [vmem:[%s418 + $0x10] sm:$0xff]
        %v422 = vld [vmem:[%s418 + $0x18] sm:$0xff]
        %v427 = vunpack.c.l.b16 %v419
        %v428 = vunpack.c.h.b16 %v419
        %v429 = vunpack.c.l.b16 %v420
        %v430 = vunpack.c.h.b16 %v420
        %v431 = vunpack.c.l.b16 %v421
        %v432 = vunpack.c.h.b16 %v421
        %v433 = vunpack.c.l.b16 %v422
        %v434 = vunpack.c.h.b16 %v422
        %v435 = vpack.c.b16 %v429, %v427
        %v436 = vpack.c.b16 %v430, %v428
        %v437 = vpack.c.b16 %v433, %v431
        %v438 = vpack.c.b16 %v434, %v432
        %v442 = vsel %vm369, %v436, 0
        %v445 = vsel %vm369, %v438, 0
        %447 = vmatpush.bf16.msra.mxu0 %v357
        %448 = vmatpush.bf16.msra.mxu0 %v356
        %449 = vmatpush.bf16.msra.mxu0 %v355
        %450 = vmatpush.bf16.msra.mxu0 %v354
        %451 = vmatpush.bf16.msra.mxu0 %v353
        %452 = vmatpush.bf16.msra.mxu0 %v352
        %453 = vmatpush.bf16.msra.mxu0 %v351
        %454 = vmatpush.bf16.msra.mxu0 %v350
        %455 = vmatmul.bf16.gmra.mxu0 %v435
        %v456 = vpop.f32.mrf.mxu0
        %v457 = vadd.f32 0.0, %v456
        %v458 = vpop.f32.mrf.mxu0
        %v459 = vadd.f32 0.0, %v458
        %460 = vmatmul.bf16.gmra.mxu0 %v437
        %v461 = vpop.f32.mrf.mxu0
        %v462 = vadd.f32 0.0, %v461
        %v463 = vpop.f32.mrf.mxu0
        %v464 = vadd.f32 0.0, %v463
        %465 = vdwg.mxu0
        %466 = vmatpush.bf16.msra.mxu0 0
        %467 = vmatpush.bf16.msra.mxu0 0
        %468 = vmatpush.bf16.msra.mxu0 0
        %469 = vmatpush.bf16.msra.mxu0 0
        %470 = vmatpush.bf16.msra.mxu0 0
        %471 = vmatpush.bf16.msra.mxu0 0
        %472 = vmatpush.bf16.msra.mxu0 %v378
        %473 = vmatpush.bf16.msra.mxu0 %v358
        %474 = vmatmul.bf16.gmra.mxu0 %v442
        %v475 = vpop.f32.mrf.mxu0
        %v476 = vadd.f32 %v457, %v475
        %v477 = vpop.f32.mrf.mxu0
        %v478 = vadd.f32 %v459, %v477
        %479 = vmatmul.bf16.gmra.mxu0 %v445
        %v480 = vpop.f32.mrf.mxu0
        %v481 = vadd.f32 %v462, %v480
        %v482 = vpop.f32.mrf.mxu0
        %v483 = vadd.f32 %v464, %v482
        %484 = vdwg.mxu0
        %v485 = vmax.f32 %v409, %v476
        %v486 = vmax.f32 %v411, %v478
        %v487 = vmax.f32 %v414, %v481
        %v488 = vmax.f32 %v416, %v483
        %s489 = scalar_lea.vmem %s242, 64 [#allocation2]
        %v490 = vld [vmem:[%s489] sm:$0xff]
        %v491 = vld [vmem:[%s489 + $0x8] sm:$0xff]
        %v492 = vld [vmem:[%s489 + $0x10] sm:$0xff]
        %v493 = vld [vmem:[%s489 + $0x18] sm:$0xff]
        %v498 = vunpack.c.l.b16 %v490
        %v499 = vunpack.c.h.b16 %v490
        %v500 = vunpack.c.l.b16 %v491
        %v501 = vunpack.c.h.b16 %v491
        %v502 = vunpack.c.l.b16 %v492
        %v503 = vunpack.c.h.b16 %v492
        %v504 = vunpack.c.l.b16 %v493
        %v505 = vunpack.c.h.b16 %v493
        %v506 = vpack.c.b16 %v500, %v498
        %v507 = vpack.c.b16 %v501, %v499
        %v508 = vpack.c.b16 %v504, %v502
        %v509 = vpack.c.b16 %v505, %v503
        %v513 = vsel %vm369, %v507, 0
        %v516 = vsel %vm369, %v509, 0
        %518 = vmatpush.bf16.msra.mxu0 %v357
        %519 = vmatpush.bf16.msra.mxu0 %v356
        %520 = vmatpush.bf16.msra.mxu0 %v355
        %521 = vmatpush.bf16.msra.mxu0 %v354
        %522 = vmatpush.bf16.msra.mxu0 %v353
        %523 = vmatpush.bf16.msra.mxu0 %v352
        %524 = vmatpush.bf16.msra.mxu0 %v351
        %525 = vmatpush.bf16.msra.mxu0 %v350
        %526 = vmatmul.bf16.gmra.mxu0 %v506
        %v527 = vpop.f32.mrf.mxu0
        %v528 = vadd.f32 0.0, %v527
        %v529 = vpop.f32.mrf.mxu0
        %v530 = vadd.f32 0.0, %v529
        %531 = vmatmul.bf16.gmra.mxu0 %v508
        %v532 = vpop.f32.mrf.mxu0
        %v533 = vadd.f32 0.0, %v532
        %v534 = vpop.f32.mrf.mxu0
        %v535 = vadd.f32 0.0, %v534
        %536 = vdwg.mxu0
        %537 = vmatpush.bf16.msra.mxu0 0
        %538 = vmatpush.bf16.msra.mxu0 0
        %539 = vmatpush.bf16.msra.mxu0 0
        %540 = vmatpush.bf16.msra.mxu0 0
        %541 = vmatpush.bf16.msra.mxu0 0
        %542 = vmatpush.bf16.msra.mxu0 0
        %543 = vmatpush.bf16.msra.mxu0 %v378
        %544 = vmatpush.bf16.msra.mxu0 %v358
        %545 = vmatmul.bf16.gmra.mxu0 %v513
        %v546 = vpop.f32.mrf.mxu0
        %v547 = vadd.f32 %v528, %v546
        %v548 = vpop.f32.mrf.mxu0
        %v549 = vadd.f32 %v530, %v548
        %550 = vmatmul.bf16.gmra.mxu0 %v516
        %v551 = vpop.f32.mrf.mxu0
        %v552 = vadd.f32 %v533, %v551
        %v553 = vpop.f32.mrf.mxu0
        %v554 = vadd.f32 %v535, %v553
        %555 = vdwg.mxu0
        %v556 = vmax.f32 %v485, %v547
        %v557 = vmax.f32 %v486, %v549
        %v558 = vmax.f32 %v487, %v552
        %v559 = vmax.f32 %v488, %v554
        %s560 = scalar_lea.vmem %s242, 96 [#allocation2]
        %v561 = vld [vmem:[%s560] sm:$0xff]
        %v562 = vld [vmem:[%s560 + $0x8] sm:$0xff]
        %v563 = vld [vmem:[%s560 + $0x10] sm:$0xff]
        %v564 = vld [vmem:[%s560 + $0x18] sm:$0xff]
        %v569 = vunpack.c.l.b16 %v561
        %v570 = vunpack.c.h.b16 %v561
        %v571 = vunpack.c.l.b16 %v562
        %v572 = vunpack.c.h.b16 %v562
        %v573 = vunpack.c.l.b16 %v563
        %v574 = vunpack.c.h.b16 %v563
        %v575 = vunpack.c.l.b16 %v564
        %v576 = vunpack.c.h.b16 %v564
        %v577 = vpack.c.b16 %v571, %v569
        %v578 = vpack.c.b16 %v572, %v570
        %v579 = vpack.c.b16 %v575, %v573
        %v580 = vpack.c.b16 %v576, %v574
        %v584 = vsel %vm369, %v578, 0
        %v587 = vsel %vm369, %v580, 0
        %589 = vmatpush.bf16.msra.mxu0 %v357
        %590 = vmatpush.bf16.msra.mxu0 %v356
        %591 = vmatpush.bf16.msra.mxu0 %v355
        %592 = vmatpush.bf16.msra.mxu0 %v354
        %593 = vmatpush.bf16.msra.mxu0 %v353
        %594 = vmatpush.bf16.msra.mxu0 %v352
        %595 = vmatpush.bf16.msra.mxu0 %v351
        %596 = vmatpush.bf16.msra.mxu0 %v350
        %597 = vmatmul.bf16.gmra.mxu0 %v577
        %v598 = vpop.f32.mrf.mxu0
        %v599 = vadd.f32 0.0, %v598
        %v600 = vpop.f32.mrf.mxu0
        %v601 = vadd.f32 0.0, %v600
        %602 = vmatmul.bf16.gmra.mxu0 %v579
        %v603 = vpop.f32.mrf.mxu0
        %v604 = vadd.f32 0.0, %v603
        %v605 = vpop.f32.mrf.mxu0
        %v606 = vadd.f32 0.0, %v605
        %607 = vdwg.mxu0
        %608 = vmatpush.bf16.msra.mxu0 0
        %609 = vmatpush.bf16.msra.mxu0 0
        %610 = vmatpush.bf16.msra.mxu0 0
        %611 = vmatpush.bf16.msra.mxu0 0
        %612 = vmatpush.bf16.msra.mxu0 0
        %613 = vmatpush.bf16.msra.mxu0 0
        %614 = vmatpush.bf16.msra.mxu0 %v378
        %615 = vmatpush.bf16.msra.mxu0 %v358
        %616 = vmatmul.bf16.gmra.mxu0 %v584
        %v617 = vpop.f32.mrf.mxu0
        %v618 = vadd.f32 %v599, %v617
        %v619 = vpop.f32.mrf.mxu0
        %v620 = vadd.f32 %v601, %v619
        %621 = vmatmul.bf16.gmra.mxu0 %v587
        %v622 = vpop.f32.mrf.mxu0
        %v623 = vadd.f32 %v604, %v622
        %v624 = vpop.f32.mrf.mxu0
        %v625 = vadd.f32 %v606, %v624
        %626 = vdwg.mxu0
        %v627 = vmax.f32 %v556, %v618
        %v628 = vmax.f32 %v557, %v620
        %v629 = vmax.f32 %v558, %v623
        %v630 = vmax.f32 %v559, %v625
        %v631 = vld [vmem:[%s2] sm:$0x1]
        %v633 = vperm.slane %v631, 0
        %v635 = vadd.f32 %v627, %v633
        %v636 = vadd.f32 %v628, %v633
        %v637 = vadd.f32 %v629, %v633
        %v638 = vadd.f32 %v630, %v633
        %v639 = vmax.f32 %v635, 0.0
        %v640 = vmax.f32 %v636, 0.0
        %v641 = vmax.f32 %v637, 0.0
        %v642 = vmax.f32 %v638, 0.0
        %v643 = vpack.c.bf16 %v639, %v639
        %v644 = vpack.c.bf16 %v640, %v640
        %v645 = vpack.c.bf16 %v641, %v641
        %v646 = vpack.c.bf16 %v642, %v642
        %647 = vst [vmem:[%s268] sm:$0xf] %v643
        %648 = vst [vmem:[%s268 + $0x4] sm:$0xf] %v644
        %649 = vst [vmem:[%s268 + $0x8] sm:$0xf] %v645
        %650 = vst [vmem:[%s268 + $0xc] sm:$0xf] %v646
        %s651 = smul.u32 4, %s14
        %p652 = scmp.lt.s32.totalorder %s651, 7
        %s653 = scalar_select %p652, %s651, 7
        %s654 = smul.addr %s653, 4
        %s655 = scalar_lea.vmem %s3, %s654
        // Predicated region
        $region71: #{lenet_forward.4} parent=65 // pred_check
          %p656 = pneg %p100
        $region72: #{lenet_forward.4} parent=65 // pred_check_branch
          %658 = sbr.rel (%p656) target = $region74
        $region73: #{lenet_forward.4} parent=65 // pred_region
          %s659 = smul.u32 4, %s14
        $region74: #{lenet_forward.4} parent=65 // pred_fallthru
          _
      $region66: #{lenet_forward.4} parent=5 // pred_fallthru
        _
      %p660 = scmp.le.s32.totalorder 2, %s9
      // Predicated region
      $region75: #{lenet_forward.4} parent=5 // pred_check
        %p661 = pneg %p660
      $region76: #{lenet_forward.4} parent=5 // pred_check_branch
        %663 = sbr.rel (%p661) target = $region78
      $region77: #{lenet_forward.4} parent=5 // pred_region
        %s664 = ssub.s32 %s9, 2
        // Predicated region
        $region79: #{lenet_forward.4} parent=77 // pred_check
          %p665 = pneg %p106
        $region80: #{lenet_forward.4} parent=77 // pred_check_branch
          %667 = sbr.rel (%p665) target = $region82
        $region81: #{lenet_forward.4} parent=77 // pred_region
          %s668 = smul.u32 4, %s15
          %p669 = scmp.lt.s32.totalorder %s668, 7
          %s670 = scalar_select %p669, %s668, 7
          %s671 = smul.addr %s670, 4
          %s672 = scalar_lea.vmem %s3, %s671
        $region82: #{lenet_forward.4} parent=77 // pred_fallthru
          _
      $region78: #{lenet_forward.4} parent=5 // pred_fallthru
        _
    $region6: #{lenet_forward.4} parent=1 // loop_footer
      %s13 = sadd.s32 1, %s9
    $region7: #{lenet_forward.4} parent=1 // loop_footer_branch
      %8 = sbr.rel target = $region3
    $region8: #{lenet_forward.4} parent=1 // loop_exit
      _

// kernel: lenet_forward.5
$region0: #{lenet_forward.5}
  #allocation0 [shape = 'u32[]', space=smem, size = 0x4, offset = 0x4, fixed_abs, tag = 'smem constant byte address 0x4 - core index']
  #allocation1 [shape = 'u32[72,128]{1,0:T(1,128)}', space=vmem, size = 0x9000, scoped, tag = 'internal scratch']
  %s0 = inlined_call_operand.vmem [shape: bf16[8,400], index: 0, kind: input, shape index: {}]
  %s1 = inlined_call_operand.vmem [shape: bf16[400,128], index: 1, kind: input, shape index: {}]
  %s2 = inlined_call_operand.vmem [shape: f32[1,128], index: 2, kind: input, shape index: {}]
  %s3 = inlined_call_operand.vmem [shape: bf16[128,128], index: 3, kind: input, shape index: {}]
  %s4 = inlined_call_operand.vmem [shape: f32[1,128], index: 4, kind: input, shape index: {}]
  %s5 = inlined_call_operand.vmem [shape: bf16[128,128], index: 5, kind: input, shape index: {}]
  %s6 = inlined_call_operand.vmem [shape: f32[1,128], index: 6, kind: input, shape index: {}]
  %s7 = inlined_call_operand.vmem [shape: f32[8,128], index: 7, kind: output, shape index: {}]
  %s8 = sld [smem:[#allocation0]]
  $region38: #{lenet_forward.5} parent=0
    _
  %s10 = ssub.s32 1, %s8
  %s11 = scalar_select 0, %s10, %s8
  // Predicated region
  $region2: #{lenet_forward.5} parent=0 // pred_check
    _
  $region3: #{lenet_forward.5} parent=0 // pred_check_branch
    %13 = sbr.rel (0) target = $region5
  $region4: #{lenet_forward.5} parent=0 // pred_region
    _
  $region5: #{lenet_forward.5} parent=0 // pred_fallthru
    _
  // Predicated region
  $region6: #{lenet_forward.5} parent=0 // pred_check
    _
  $region7: #{lenet_forward.5} parent=0 // pred_check_branch
    %15 = sbr.rel (0) target = $region9
  $region8: #{lenet_forward.5} parent=0 // pred_region
    _
  $region9: #{lenet_forward.5} parent=0 // pred_fallthru
    _
  // Predicated region
  $region10: #{lenet_forward.5} parent=0 // pred_check
    _
  $region11: #{lenet_forward.5} parent=0 // pred_check_branch
    %17 = sbr.rel (0) target = $region13
  $region12: #{lenet_forward.5} parent=0 // pred_region
    _
  $region13: #{lenet_forward.5} parent=0 // pred_fallthru
    _
  // Predicated region
  $region14: #{lenet_forward.5} parent=0 // pred_check
    _
  $region15: #{lenet_forward.5} parent=0 // pred_check_branch
    %19 = sbr.rel (0) target = $region17
  $region16: #{lenet_forward.5} parent=0 // pred_region
    _
  $region17: #{lenet_forward.5} parent=0 // pred_fallthru
    _
  // Predicated region
  $region18: #{lenet_forward.5} parent=0 // pred_check
    _
  $region19: #{lenet_forward.5} parent=0 // pred_check_branch
    %21 = sbr.rel (0) target = $region21
  $region20: #{lenet_forward.5} parent=0 // pred_region
    _
  $region21: #{lenet_forward.5} parent=0 // pred_fallthru
    _
  // Predicated region
  $region22: #{lenet_forward.5} parent=0 // pred_check
    _
  $region23: #{lenet_forward.5} parent=0 // pred_check_branch
    %23 = sbr.rel (0) target = $region25
  $region24: #{lenet_forward.5} parent=0 // pred_region
    _
  $region25: #{lenet_forward.5} parent=0 // pred_fallthru
    _
  // Predicated region
  $region26: #{lenet_forward.5} parent=0 // pred_check
    _
  $region27: #{lenet_forward.5} parent=0 // pred_check_branch
    %25 = sbr.rel (0) target = $region29
  $region28: #{lenet_forward.5} parent=0 // pred_region
    _
  $region29: #{lenet_forward.5} parent=0 // pred_fallthru
    _
  %v27 = vld [vmem:[%s0] sm:$0xff]
  %v28 = vld [vmem:[%s0 + $0x8] sm:$0xff]
  %v29 = vld [vmem:[%s1] sm:$0xf]
  %v30 = vld [vmem:[%s1 + $0x4] sm:$0xf]
  %v31 = vld [vmem:[%s1 + $0x8] sm:$0xf]
  %v32 = vld [vmem:[%s1 + $0xc] sm:$0xf]
  %v33 = vld [vmem:[%s1 + $0x10] sm:$0xf]
  %v34 = vld [vmem:[%s1 + $0x14] sm:$0xf]
  %v35 = vld [vmem:[%s1 + $0x18] sm:$0xf]
  %v36 = vld [vmem:[%s1 + $0x1c] sm:$0xf]
  %v37 = vld [vmem:[%s1 + $0x20] sm:$0xf]
  %v38 = vld [vmem:[%s1 + $0x24] sm:$0xf]
  %v39 = vld [vmem:[%s1 + $0x28] sm:$0xf]
  %v40 = vld [vmem:[%s1 + $0x2c] sm:$0xf]
  %v41 = vld [vmem:[%s1 + $0x30] sm:$0xf]
  %v42 = vld [vmem:[%s1 + $0x34] sm:$0xf]
  %v43 = vld [vmem:[%s1 + $0x38] sm:$0xf]
  %v44 = vld [vmem:[%s1 + $0x3c] sm:$0xf]
  %v45 = vld [vmem:[%s1 + $0x40] sm:$0xf]
  %v46 = vld [vmem:[%s1 + $0x44] sm:$0xf]
  %v47 = vld [vmem:[%s1 + $0x48] sm:$0xf]
  %v48 = vld [vmem:[%s1 + $0x4c] sm:$0xf]
  %v49 = vld [vmem:[%s1 + $0x50] sm:$0xf]
  %v50 = vld [vmem:[%s1 + $0x54] sm:$0xf]
  %v51 = vld [vmem:[%s1 + $0x58] sm:$0xf]
  %v52 = vld [vmem:[%s1 + $0x5c] sm:$0xf]
  %v53 = vld [vmem:[%s1 + $0x60] sm:$0xf]
  %v54 = vld [vmem:[%s1 + $0x64] sm:$0xf]
  %v55 = vld [vmem:[%s1 + $0x68] sm:$0xf]
  %v56 = vld [vmem:[%s1 + $0x6c] sm:$0xf]
  %v57 = vld [vmem:[%s1 + $0x70] sm:$0xf]
  %v58 = vld [vmem:[%s1 + $0x74] sm:$0xf]
  %v59 = vld [vmem:[%s1 + $0x78] sm:$0xf]
  %v60 = vld [vmem:[%s1 + $0x7c] sm:$0xf]
  %v61 = vld [vmem:[%s1 + $0x80] sm:$0xf]
  %v62 = vld [vmem:[%s1 + $0x84] sm:$0xf]
  %v63 = vld [vmem:[%s1 + $0x88] sm:$0xf]
  %v64 = vld [vmem:[%s1 + $0x8c] sm:$0xf]
  %v65 = vld [vmem:[%s1 + $0x90] sm:$0xf]
  %v66 = vld [vmem:[%s1 + $0x94] sm:$0xf]
  %v67 = vld [vmem:[%s1 + $0x98] sm:$0xf]
  %v68 = vld [vmem:[%s1 + $0x9c] sm:$0xf]
  %v69 = vld [vmem:[%s1 + $0xa0] sm:$0xf]
  %v70 = vld [vmem:[%s1 + $0xa4] sm:$0xf]
  %v71 = vld [vmem:[%s1 + $0xa8] sm:$0xf]
  %v72 = vld [vmem:[%s1 + $0xac] sm:$0xf]
  %v73 = vld [vmem:[%s1 + $0xb0] sm:$0xf]
  %v74 = vld [vmem:[%s1 + $0xb4] sm:$0xf]
  %v75 = vld [vmem:[%s1 + $0xb8] sm:$0xf]
  %v76 = vld [vmem:[%s1 + $0xbc] sm:$0xf]
  %v77 = vld [vmem:[%s1 + $0xc0] sm:$0xf]
  %v78 = vld [vmem:[%s1 + $0xc4] sm:$0xf]
  %v79 = vld [vmem:[%s2] sm:$0x1]
  %v81 = vperm.slane %v79, 0
  %v85 = vunpack.c.l.b16 %v27
  %v86 = vunpack.c.h.b16 %v27
  %v87 = vunpack.c.l.b16 %v28
  %v88 = vunpack.c.h.b16 %v28
  %v89 = vpack.c.b16 %v85, %v85
  %v90 = vpack.c.b16 %v86, %v86
  %v91 = vpack.c.b16 %v87, %v87
  %v92 = vpack.c.b16 %v88, %v88
  %v146 = vunpack.c.l.b16 %v29
  %v147 = vunpack.c.l.b16 %v30
  %v148 = vunpack.c.l.b16 %v31
  %v149 = vunpack.c.l.b16 %v32
  %v150 = vunpack.c.l.b16 %v33
  %v151 = vunpack.c.l.b16 %v34
  %v152 = vunpack.c.l.b16 %v35
  %v153 = vunpack.c.l.b16 %v36
  %v154 = vunpack.c.l.b16 %v37
  %v155 = vunpack.c.l.b16 %v38
  %v156 = vunpack.c.l.b16 %v39
  %v157 = vunpack.c.l.b16 %v40
  %v158 = vunpack.c.l.b16 %v41
  %v159 = vunpack.c.l.b16 %v42
  %v160 = vunpack.c.l.b16 %v43
  %v161 = vunpack.c.l.b16 %v44
  %v162 = vunpack.c.l.b16 %v45
  %v163 = vunpack.c.l.b16 %v46
  %v164 = vunpack.c.l.b16 %v47
  %v165 = vunpack.c.l.b16 %v48
  %v166 = vunpack.c.l.b16 %v49
  %v167 = vunpack.c.l.b16 %v50
  %v168 = vunpack.c.l.b16 %v51
  %v169 = vunpack.c.l.b16 %v52
  %v170 = vunpack.c.l.b16 %v53
  %v171 = vunpack.c.l.b16 %v54
  %v172 = vunpack.c.l.b16 %v55
  %v173 = vunpack.c.l.b16 %v56
  %v174 = vunpack.c.l.b16 %v57
  %v175 = vunpack.c.l.b16 %v58
  %v176 = vunpack.c.l.b16 %v59
  %v177 = vunpack.c.l.b16 %v60
  %v178 = vunpack.c.l.b16 %v61
  %v179 = vunpack.c.l.b16 %v62
  %v180 = vunpack.c.l.b16 %v63
  %v181 = vunpack.c.l.b16 %v64
  %v182 = vunpack.c.l.b16 %v65
  %v183 = vunpack.c.l.b16 %v66
  %v184 = vunpack.c.l.b16 %v67
  %v185 = vunpack.c.l.b16 %v68
  %v186 = vunpack.c.l.b16 %v69
  %v187 = vunpack.c.l.b16 %v70
  %v188 = vunpack.c.l.b16 %v71
  %v189 = vunpack.c.l.b16 %v72
  %v190 = vunpack.c.l.b16 %v73
  %v191 = vunpack.c.l.b16 %v74
  %v192 = vunpack.c.l.b16 %v75
  %v193 = vunpack.c.l.b16 %v76
  %v194 = vunpack.c.l.b16 %v77
  %v195 = vunpack.c.l.b16 %v78
  %v196 = vpack.c.b16 %v147, %v146
  %v197 = vpack.c.b16 %v149, %v148
  %v198 = vpack.c.b16 %v151, %v150
  %v199 = vpack.c.b16 %v153, %v152
  %v200 = vpack.c.b16 %v155, %v154
  %v201 = vpack.c.b16 %v157, %v156
  %v202 = vpack.c.b16 %v159, %v158
  %v203 = vpack.c.b16 %v161, %v160
  %v204 = vpack.c.b16 %v163, %v162
  %v205 = vpack.c.b16 %v165, %v164
  %v206 = vpack.c.b16 %v167, %v166
  %v207 = vpack.c.b16 %v169, %v168
  %v208 = vpack.c.b16 %v171, %v170
  %v209 = vpack.c.b16 %v173, %v172
  %v210 = vpack.c.b16 %v175, %v174
  %v211 = vpack.c.b16 %v177, %v176
  %v212 = vpack.c.b16 %v179, %v178
  %v213 = vpack.c.b16 %v181, %v180
  %v214 = vpack.c.b16 %v183, %v182
  %v215 = vpack.c.b16 %v185, %v184
  %v216 = vpack.c.b16 %v187, %v186
  %v217 = vpack.c.b16 %v189, %v188
  %v218 = vpack.c.b16 %v191, %v190
  %v219 = vpack.c.b16 %v193, %v192
  %v220 = vpack.c.b16 %v195, %v194
  %vm246 = vcmask 130048
  %v248 = vsel %vm246, %v92, 0
  %250 = vmatpush.bf16.msra.mxu0 %v203
  %251 = vmatpush.bf16.msra.mxu0 %v202
  %252 = vmatpush.bf16.msra.mxu0 %v201
  %253 = vmatpush.bf16.msra.mxu0 %v200
  %254 = vmatpush.bf16.msra.mxu0 %v199
  %255 = vmatpush.bf16.msra.mxu0 %v198
  %256 = vmatpush.bf16.msra.mxu0 %v197
  %257 = vmatpush.bf16.msra.mxu0 %v196
  %258 = vmatmul.bf16.gmra.mxu0 %v89
  %v259 = vpop.f32.mrf.mxu0
  %v260 = vadd.f32 %v81, %v259
  %v261 = vpop.f32.mrf.mxu0
  %262 = vdwg.mxu0
  %263 = vmatpush.bf16.msra.mxu0 %v211
  %264 = vmatpush.bf16.msra.mxu0 %v210
  %265 = vmatpush.bf16.msra.mxu0 %v209
  %266 = vmatpush.bf16.msra.mxu0 %v208
  %267 = vmatpush.bf16.msra.mxu0 %v207
  %268 = vmatpush.bf16.msra.mxu0 %v206
  %269 = vmatpush.bf16.msra.mxu0 %v205
  %270 = vmatpush.bf16.msra.mxu0 %v204
  %271 = vmatmul.bf16.gmra.mxu0 %v90
  %v272 = vpop.f32.mrf.mxu0
  %v273 = vadd.f32 %v260, %v272
  %v274 = vpop.f32.mrf.mxu0
  %275 = vdwg.mxu0
  %276 = vmatpush.bf16.msra.mxu0 %v219
  %277 = vmatpush.bf16.msra.mxu0 %v218
  %278 = vmatpush.bf16.msra.mxu0 %v217
  %279 = vmatpush.bf16.msra.mxu0 %v216
  %280 = vmatpush.bf16.msra.mxu0 %v215
  %281 = vmatpush.bf16.msra.mxu0 %v214
  %282 = vmatpush.bf16.msra.mxu0 %v213
  %283 = vmatpush.bf16.msra.mxu0 %v212
  %284 = vmatmul.bf16.gmra.mxu0 %v91
  %v285 = vpop.f32.mrf.mxu0
  %v286 = vadd.f32 %v273, %v285
  %v287 = vpop.f32.mrf.mxu0
  %288 = vdwg.mxu0
  %289 = vmatpush.bf16.msra.mxu0 0
  %290 = vmatpush.bf16.msra.mxu0 0
  %291 = vmatpush.bf16.msra.mxu0 0
  %292 = vmatpush.bf16.msra.mxu0 0
  %293 = vmatpush.bf16.msra.mxu0 0
  %294 = vmatpush.bf16.msra.mxu0 0
  %295 = vmatpush.bf16.msra.mxu0 0
  %296 = vmatpush.bf16.msra.mxu0 %v220
  %297 = vmatmul.bf16.gmra.mxu0 %v248
  %v298 = vpop.f32.mrf.mxu0
  %v299 = vadd.f32 %v286, %v298
  %v300 = vpop.f32.mrf.mxu0
  %301 = vdwg.mxu0
  %v302 = vmax.f32 %v299, 0.0
  %v303 = vpack.c.bf16 %v302, %v302
  %v304 = vld [vmem:[%s3] sm:$0xf]
  %v305 = vld [vmem:[%s3 + $0x4] sm:$0xf]
  %v306 = vld [vmem:[%s3 + $0x8] sm:$0xf]
  %v307 = vld [vmem:[%s3 + $0xc] sm:$0xf]
  %v308 = vld [vmem:[%s3 + $0x10] sm:$0xf]
  %v309 = vld [vmem:[%s3 + $0x14] sm:$0xf]
  %v310 = vld [vmem:[%s3 + $0x18] sm:$0xf]
  %v311 = vld [vmem:[%s3 + $0x1c] sm:$0xf]
  %v312 = vld [vmem:[%s3 + $0x20] sm:$0xf]
  %v313 = vld [vmem:[%s3 + $0x24] sm:$0xf]
  %v314 = vld [vmem:[%s3 + $0x28] sm:$0xf]
  %v315 = vld [vmem:[%s3 + $0x2c] sm:$0xf]
  %v316 = vld [vmem:[%s3 + $0x30] sm:$0xf]
  %v317 = vld [vmem:[%s3 + $0x34] sm:$0xf]
  %v318 = vld [vmem:[%s3 + $0x38] sm:$0xf]
  %v319 = vld [vmem:[%s3 + $0x3c] sm:$0xf]
  %v320 = vld [vmem:[%s4] sm:$0x1]
  %v322 = vperm.slane %v320, 0
  %v340 = vunpack.c.l.b16 %v304
  %v341 = vunpack.c.l.b16 %v305
  %v342 = vunpack.c.l.b16 %v306
  %v343 = vunpack.c.l.b16 %v307
  %v344 = vunpack.c.l.b16 %v308
  %v345 = vunpack.c.l.b16 %v309
  %v346 = vunpack.c.l.b16 %v310
  %v347 = vunpack.c.l.b16 %v311
  %v348 = vunpack.c.l.b16 %v312
  %v349 = vunpack.c.l.b16 %v313
  %v350 = vunpack.c.l.b16 %v314
  %v351 = vunpack.c.l.b16 %v315
  %v352 = vunpack.c.l.b16 %v316
  %v353 = vunpack.c.l.b16 %v317
  %v354 = vunpack.c.l.b16 %v318
  %v355 = vunpack.c.l.b16 %v319
  %v356 = vpack.c.b16 %v341, %v340
  %v357 = vpack.c.b16 %v343, %v342
  %v358 = vpack.c.b16 %v345, %v344
  %v359 = vpack.c.b16 %v347, %v346
  %v360 = vpack.c.b16 %v349, %v348
  %v361 = vpack.c.b16 %v351, %v350
  %v362 = vpack.c.b16 %v353, %v352
  %v363 = vpack.c.b16 %v355, %v354
  %372 = vmatpush.bf16.msra.mxu0 %v363
  %373 = vmatpush.bf16.msra.mxu0 %v362
  %374 = vmatpush.bf16.msra.mxu0 %v361
  %375 = vmatpush.bf16.msra.mxu0 %v360
  %376 = vmatpush.bf16.msra.mxu0 %v359
  %377 = vmatpush.bf16.msra.mxu0 %v358
  %378 = vmatpush.bf16.msra.mxu0 %v357
  %379 = vmatpush.bf16.msra.mxu0 %v356
  %380 = vmatmul.bf16.gmra.mxu0 %v303
  %v381 = vpop.f32.mrf.mxu0
  %v382 = vadd.f32 %v322, %v381
  %v383 = vpop.f32.mrf.mxu0
  %384 = vdwg.mxu0
  %v385 = vmax.f32 %v382, 0.0
  %v386 = vpack.c.bf16 %v385, %v385
  %v387 = vld [vmem:[%s5] sm:$0xf]
  %v388 = vld [vmem:[%s5 + $0x4] sm:$0xf]
  %v389 = vld [vmem:[%s5 + $0x8] sm:$0xf]
  %v390 = vld [vmem:[%s5 + $0xc] sm:$0xf]
  %v391 = vld [vmem:[%s5 + $0x10] sm:$0xf]
  %v392 = vld [vmem:[%s5 + $0x14] sm:$0xf]
  %v393 = vld [vmem:[%s5 + $0x18] sm:$0xf]
  %v394 = vld [vmem:[%s5 + $0x1c] sm:$0xf]
  %v395 = vld [vmem:[%s5 + $0x20] sm:$0xf]
  %v396 = vld [vmem:[%s5 + $0x24] sm:$0xf]
  %v397 = vld [vmem:[%s5 + $0x28] sm:$0xf]
  %v398 = vld [vmem:[%s5 + $0x2c] sm:$0xf]
  %v399 = vld [vmem:[%s5 + $0x30] sm:$0xf]
  %v400 = vld [vmem:[%s5 + $0x34] sm:$0xf]
  %v401 = vld [vmem:[%s5 + $0x38] sm:$0xf]
  %v402 = vld [vmem:[%s5 + $0x3c] sm:$0xf]
  %v403 = vld [vmem:[%s6] sm:$0x1]
  %v405 = vperm.slane %v403, 0
  %v423 = vunpack.c.l.b16 %v387
  %v424 = vunpack.c.l.b16 %v388
  %v425 = vunpack.c.l.b16 %v389
  %v426 = vunpack.c.l.b16 %v390
  %v427 = vunpack.c.l.b16 %v391
  %v428 = vunpack.c.l.b16 %v392
  %v429 = vunpack.c.l.b16 %v393
  %v430 = vunpack.c.l.b16 %v394
  %v431 = vunpack.c.l.b16 %v395
  %v432 = vunpack.c.l.b16 %v396
  %v433 = vunpack.c.l.b16 %v397
  %v434 = vunpack.c.l.b16 %v398
  %v435 = vunpack.c.l.b16 %v399
  %v436 = vunpack.c.l.b16 %v400
  %v437 = vunpack.c.l.b16 %v401
  %v438 = vunpack.c.l.b16 %v402
  %v439 = vpack.c.b16 %v424, %v423
  %v440 = vpack.c.b16 %v426, %v425
  %v441 = vpack.c.b16 %v428, %v427
  %v442 = vpack.c.b16 %v430, %v429
  %v443 = vpack.c.b16 %v432, %v431
  %v444 = vpack.c.b16 %v434, %v433
  %v445 = vpack.c.b16 %v436, %v435
  %v446 = vpack.c.b16 %v438, %v437
  %455 = vmatpush.bf16.msra.mxu0 %v446
  %456 = vmatpush.bf16.msra.mxu0 %v445
  %457 = vmatpush.bf16.msra.mxu0 %v444
  %458 = vmatpush.bf16.msra.mxu0 %v443
  %459 = vmatpush.bf16.msra.mxu0 %v442
  %460 = vmatpush.bf16.msra.mxu0 %v441
  %461 = vmatpush.bf16.msra.mxu0 %v440
  %462 = vmatpush.bf16.msra.mxu0 %v439
  %463 = vmatmul.bf16.gmra.mxu0 %v386
  %v464 = vpop.f32.mrf.mxu0
  %v465 = vadd.f32 %v405, %v464
  %v466 = vpop.f32.mrf.mxu0
  %467 = vdwg.mxu0
  %468 = vst [vmem:[%s7] sm:$0xff] %v465
  // Predicated region
  $region30: #{lenet_forward.5} parent=0 // pred_check
    _
  $region31: #{lenet_forward.5} parent=0 // pred_check_branch
    %470 = sbr.rel (0) target = $region33
  $region32: #{lenet_forward.5} parent=0 // pred_region
    _
  $region33: #{lenet_forward.5} parent=0 // pred_fallthru
    _
  // Predicated region
  $region34: #{lenet_forward.5} parent=0 // pred_check
    _
  $region35: #{lenet_forward.5} parent=0 // pred_check_branch
    %472 = sbr.rel (0) target = $region37
  $region36: #{lenet_forward.5} parent=0 // pred_region
    _
  $region37: #{lenet_forward.5} parent=0 // pred_fallthru
    _

</llo_original>
